<compile_context>
chip_gen: v5e
topology: v5e:2x2
jax: 0.10.0
libtpu: 0.0.40
codegen_flags: <defaults>
</compile_context>

<pallas_src>
import functools

import jax
import jax.numpy as jnp
from jax import lax
from jax.experimental import pallas as pl
from jax.experimental.pallas import tpu as pltpu

BN_EPS = 1e-5


# ---------------------------------------------------------------------------
# Fused kernel: expand -> depthwise -> project (+ residual) for one row tile.
# ---------------------------------------------------------------------------
def _fused_ir_kernel(*refs, H, W, Wo, tile_rows, stride, has_expand, use_res):
    if has_expand:
        (xp_ref, w_exp_ref, s_exp_ref, b_exp_ref,
         w_dw_ref, s_dw_ref, b_dw_ref,
         w_proj_ref, s_proj_ref, b_proj_ref, o_ref) = refs
    else:
        (xp_ref, w_dw_ref, s_dw_ref, b_dw_ref,
         w_proj_ref, s_proj_ref, b_proj_ref, o_ref) = refs

    Wp = W + 2                                # padded width (zero ring of 1)
    in_rows = (tile_rows - 1) * stride + 3    # input rows needed incl. halo
    step = tile_rows * stride
    r0 = pl.multiple_of(pl.program_id(1) * step, step)   # first padded in-row

    # Un-expanded input slab for this tile (includes the 1-row halo), in VMEM.
    x_slab = xp_ref[pl.ds(r0, in_rows), :, :]             # (in_rows, W+2, Cin)
    cin = x_slab.shape[-1]

    # --- 1x1 expand + BN + ReLU6 (skipped when expand_ratio == 1) ----------
    if has_expand:
        h = jnp.dot(x_slab.reshape(in_rows * Wp, cin).astype(jnp.float32),
                    w_exp_ref[...], preferred_element_type=jnp.float32)
        h = h * s_exp_ref[...] + b_exp_ref[...]
        h = jnp.clip(h, 0.0, 6.0)
        c_mid = h.shape[-1]
        eslab = h.reshape(in_rows, Wp, c_mid)
    else:
        eslab = x_slab.astype(jnp.float32)
        c_mid = cin

    # Zero the spatial padding ring: the depthwise conv pads the *activation*
    # with zeros, but expand+BN of a zero-padded input is not zero.
    row_ids = lax.broadcasted_iota(jnp.int32, (in_rows, Wp, 1), 0) + r0
    col_ids = lax.broadcasted_iota(jnp.int32, (in_rows, Wp, 1), 1)
    valid = (row_ids >= 1) & (row_ids <= H) & (col_ids >= 1) & (col_ids <= W)
    eslab = jnp.where(valid, eslab, 0.0)

    # --- 3x3 depthwise at OUTPUT resolution (strided reads) + BN + ReLU6 ---
    w_dw = w_dw_ref[...].astype(jnp.float32)               # (3, 3, c_mid)
    acc = jnp.zeros((tile_rows, Wo, c_mid), jnp.float32)
    for dy in range(3):
        for dx in range(3):
            patch = eslab[dy:dy + (tile_rows - 1) * stride + 1:stride,
                          dx:dx + (Wo - 1) * stride + 1:stride, :]
            acc = acc + patch * w_dw[dy, dx]
    acc = (acc * s_dw_ref[...].reshape(1, 1, c_mid)
           + b_dw_ref[...].reshape(1, 1, c_mid))
    acc = jnp.clip(acc, 0.0, 6.0)

    # --- 1x1 projection + BN (+ residual), no activation --------------------
    out = jnp.dot(acc.reshape(tile_rows * Wo, c_mid), w_proj_ref[...],
                  preferred_element_type=jnp.float32)
    out = out * s_proj_ref[...] + b_proj_ref[...]
    out = out.reshape(tile_rows, Wo, out.shape[-1])
    if use_res:  # stride == 1 and Cin == oup: residual rows come from x_slab
        out = out + x_slab[1:tile_rows + 1, 1:W + 1, :].astype(jnp.float32)
    o_ref[...] = out.astype(o_ref.dtype)


# ---------------------------------------------------------------------------
# Wrapper / pallas_call plumbing
# ---------------------------------------------------------------------------
def _round_up(v, m):
    return (v + m - 1) // m * m


def _pad_dim(a, axis, target):
    pad = target - a.shape[axis]
    if pad <= 0:
        return a
    widths = [(0, 0)] * a.ndim
    widths[axis] = (0, pad)
    return jnp.pad(a, widths)


def _pick_tile_rows(Ho, Wp, c_mid, stride, max_rows=8, budget_bytes=8 << 20):
    """Largest divisor of Ho whose in-kernel f32 working set fits the budget."""
    best = 1
    for th in range(1, Ho + 1):
        if Ho % th:
            continue
        in_rows = (th - 1) * stride + 3
        est = 4 * c_mid * (3 * in_rows * Wp + 4 * th * Wp)
        if th <= max_rows and est <= budget_bytes:
            best = th
    return best


def inverted_residual_nhwc(x_nhwc, params, *, stride, expand_ratio,
                           tile_rows=None):
    assert stride in (1, 2)
    N, H, W, Cin = x_nhwc.shape
    has_expand = expand_ratio != 1
    hidden = params["w_dw"].shape[-1]
    oup = params["w_proj"].shape[-1]
    use_res = (stride == 1) and (Cin == oup)

    Ho = (H - 1) // stride + 1
    Wo = (W - 1) // stride + 1
    Wp = W + 2

    # Lane-dense hidden dim (VMEM-internal only); zero-padded weights keep the
    # padded channels exactly zero through the whole pipeline.
    c_mid = _round_up(hidden, 128) if has_expand else hidden

    x = x_nhwc.astype(jnp.float32)
    xp = jnp.pad(x, ((0, 0), (1, 1), (1, 1), (0, 0)))  # small un-expanded input

    w_dw = _pad_dim(params["w_dw"].astype(jnp.float32), 2, c_mid)
    s_dw = _pad_dim(params["s_dw"].astype(jnp.float32), 1, c_mid)
    b_dw = _pad_dim(params["b_dw"].astype(jnp.float32), 1, c_mid)
    w_pr = _pad_dim(params["w_proj"].astype(jnp.float32), 0, c_mid)
    s_pr = params["s_proj"].astype(jnp.float32)
    b_pr = params["b_proj"].astype(jnp.float32)

    if tile_rows is None:
        tile_rows = _pick_tile_rows(Ho, Wp, c_mid, stride)
    assert Ho % tile_rows == 0
    n_tiles = Ho // tile_rows

    def _full(shape):
        return pl.BlockSpec(shape, lambda b, t: (0,) * len(shape))

    # Full per-sample (padded, un-expanded) input stays resident across the
    # row-tile axis (same block index -> DMA'd once per sample).
    in_specs = [pl.BlockSpec((None, H + 2, Wp, Cin), lambda b, t: (b, 0, 0, 0))]
    args = [xp]
    if has_expand:
        w_ex = _pad_dim(params["w_exp"].astype(jnp.float32), 1, c_mid)
        s_ex = _pad_dim(params["s_exp"].astype(jnp.float32), 1, c_mid)
        b_ex = _pad_dim(params["b_exp"].astype(jnp.float32), 1, c_mid)
        in_specs += [_full(w_ex.shape), _full(s_ex.shape), _full(b_ex.shape)]
        args += [w_ex, s_ex, b_ex]
    in_specs += [_full(w_dw.shape), _full(s_dw.shape), _full(b_dw.shape),
                 _full(w_pr.shape), _full(s_pr.shape), _full(b_pr.shape)]
    args += [w_dw, s_dw, b_dw, w_pr, s_pr, b_pr]

    out_spec = pl.BlockSpec((None, tile_rows, Wo, oup),
                            lambda b, t: (b, t, 0, 0))

    kernel = functools.partial(
        _fused_ir_kernel, H=H, W=W, Wo=Wo, tile_rows=tile_rows,
        stride=stride, has_expand=has_expand, use_res=use_res)

    return pl.pallas_call(
        kernel,
        out_shape=jax.ShapeDtypeStruct((N, Ho, Wo, oup), jnp.float32),
        grid_spec=pltpu.PrefetchScalarGridSpec(
            num_scalar_prefetch=0,
            grid=(N, n_tiles),
            in_specs=in_specs,
            out_specs=out_spec),
        compiler_params=pltpu.CompilerParams(
            dimension_semantics=("parallel", "parallel"),
            vmem_limit_bytes=32 * 1024 * 1024),
    )(*args)


def inverted_residual_forward(x_nchw, params, *, stride, expand_ratio,
                              tile_rows=None):
    """NCHW drop-in for the PyTorch module (eval-mode BN)."""
    x = jnp.transpose(x_nchw, (0, 2, 3, 1))          # NHWC
    out = inverted_residual_nhwc(x, params, stride=stride,
                                 expand_ratio=expand_ratio,
                                 tile_rows=tile_rows)
    return jnp.transpose(out, (0, 3, 1, 2))          # back to NCHW


# ---------------------------------------------------------------------------
# deterministic parameter init (shapes follow the PyTorch module __init__)
# ---------------------------------------------------------------------------
def _fold_bn(gamma, beta, mean, var):
    scale = gamma / jnp.sqrt(var + BN_EPS)
    bias = beta - mean * scale
    return (scale.reshape(1, -1).astype(jnp.float32),
            bias.reshape(1, -1).astype(jnp.float32))


def init_params(key, inp, oup, expand_ratio):
    hidden = int(round(inp * expand_ratio))
    ks = jax.random.split(key, 15)

    def bn(k0, k1, k2, k3, c):
        gamma = 1.0 + 0.1 * jax.random.normal(k0, (c,), jnp.float32)
        beta = 0.1 * jax.random.normal(k1, (c,), jnp.float32)
        mean = 0.1 * jax.random.normal(k2, (c,), jnp.float32)
        var = jax.random.uniform(k3, (c,), jnp.float32, 0.5, 1.5)
        return _fold_bn(gamma, beta, mean, var)

    p = {}
    if expand_ratio != 1:
        # torch weight (hidden, inp, 1, 1) -> stored as (inp, hidden)
        p["w_exp"] = 0.3 * jax.random.normal(ks[0], (inp, hidden), jnp.float32)
        p["s_exp"], p["b_exp"] = bn(ks[1], ks[2], ks[3], ks[4], hidden)
    # torch depthwise weight (hidden, 1, 3, 3) -> stored as (3, 3, hidden)
    p["w_dw"] = 0.3 * jax.random.normal(ks[5], (3, 3, hidden), jnp.float32)
    p["s_dw"], p["b_dw"] = bn(ks[6], ks[7], ks[8], ks[9], hidden)
    # torch weight (oup, hidden, 1, 1) -> stored as (hidden, oup)
    p["w_proj"] = 0.3 * jax.random.normal(ks[10], (hidden, oup), jnp.float32)
    p["s_proj"], p["b_proj"] = bn(ks[11], ks[12], ks[13], ks[14], oup)
    return p


# ---------------------------------------------------------------------------
# pure-JAX reference (lax.conv) for correctness checks
# ---------------------------------------------------------------------------
def reference_forward(x_nchw, params, *, stride, expand_ratio):
    N, Cin, H, W = x_nchw.shape
    x = jnp.transpose(x_nchw, (0, 2, 3, 1)).astype(jnp.float32)
    dn = ("NHWC", "HWIO", "NHWC")
    h = x
    if expand_ratio != 1:
        h = lax.conv_general_dilated(h, params["w_exp"][None, None, :, :],
                                     (1, 1), "VALID", dimension_numbers=dn)
        h = jnp.clip(h * params["s_exp"].reshape(1, 1, 1, -1)
                     + params["b_exp"].reshape(1, 1, 1, -1), 0.0, 6.0)
    hidden = params["w_dw"].shape[-1]
    h = lax.conv_general_dilated(h, params["w_dw"][:, :, None, :],
                                 (stride, stride), ((1, 1), (1, 1)),
                                 dimension_numbers=dn,
                                 feature_group_count=hidden)
    h = jnp.clip(h * params["s_dw"].reshape(1, 1, 1, -1)
                 + params["b_dw"].reshape(1, 1, 1, -1), 0.0, 6.0)
    oup = params["w_proj"].shape[-1]
    h = lax.conv_general_dilated(h, params["w_proj"][None, None, :, :],
                                 (1, 1), "VALID", dimension_numbers=dn)
    h = h * params["s_proj"].reshape(1, 1, 1, -1) + params["b_proj"].reshape(1, 1, 1, -1)
    if stride == 1 and Cin == oup:
        h = h + x
    return jnp.transpose(h, (0, 3, 1, 2))


if __name__ == "__main__":
    key = jax.random.PRNGKey(0)
    configs = [
        dict(inp=4, oup=4, stride=1, expand_ratio=6),   # residual path
        dict(inp=4, oup=8, stride=2, expand_ratio=6),   # strided, no residual
        dict(inp=8, oup=8, stride=1, expand_ratio=1),   # no expand stage
    ]
    for idx, cfg in enumerate(configs):
        kx, kp = jax.random.split(jax.random.fold_in(key, idx))
        x = jax.random.normal(kx, (2, cfg["inp"], 16, 16), jnp.float32)  # NCHW
        params = init_params(kp, cfg["inp"], cfg["oup"], cfg["expand_ratio"])

        fwd = jax.jit(functools.partial(inverted_residual_forward,
                                        stride=cfg["stride"],
                                        expand_ratio=cfg["expand_ratio"]))
        out = jax.block_until_ready(fwd(x, params))

        ref = reference_forward(x, params, stride=cfg["stride"],
                                expand_ratio=cfg["expand_ratio"])
        assert out.shape == ref.shape, (cfg, out.shape, ref.shape)
        max_err = float(jnp.max(jnp.abs(out - ref)))
        assert jnp.allclose(out, ref, atol=3e-3, rtol=3e-3), (cfg, max_err)
    print("KERNEL_OK")
</pallas_src>

<mosaic_0001>
module attributes {stable_mosaic.version = 11 : i64} {
  func.func @_fused_ir_kernel(%arg0: i32, %arg1: i32, %arg2: memref<1x18x18x4xf32, #tpu.memory_space<vmem>>, %arg3: memref<4x128xf32, #tpu.memory_space<vmem>>, %arg4: memref<1x128xf32, #tpu.memory_space<vmem>>, %arg5: memref<1x128xf32, #tpu.memory_space<vmem>>, %arg6: memref<3x3x128xf32, #tpu.memory_space<vmem>>, %arg7: memref<1x128xf32, #tpu.memory_space<vmem>>, %arg8: memref<1x128xf32, #tpu.memory_space<vmem>>, %arg9: memref<128x4xf32, #tpu.memory_space<vmem>>, %arg10: memref<1x4xf32, #tpu.memory_space<vmem>>, %arg11: memref<1x4xf32, #tpu.memory_space<vmem>>, %arg12: memref<1x8x16x4xf32, #tpu.memory_space<vmem>>) attributes {dimension_semantics = [#tpu.dimension_semantics<parallel>, #tpu.dimension_semantics<parallel>], iteration_bounds = array<i64: 2, 2>, scalar_prefetch = 0 : i64, scratch_operands = 0 : i64, tpu.core_type = #tpu.core_type<tc>, window_params = [{transform_indices = @transform_0, window_bounds = array<i64: 1, 18, 18, 4>}, {pipeline_mode = #tpu.pipeline_mode<synchronous>, transform_indices = @transform_1, window_bounds = array<i64: 4, 128>}, {pipeline_mode = #tpu.pipeline_mode<synchronous>, transform_indices = @transform_2, window_bounds = array<i64: 1, 128>}, {pipeline_mode = #tpu.pipeline_mode<synchronous>, transform_indices = @transform_3, window_bounds = array<i64: 1, 128>}, {pipeline_mode = #tpu.pipeline_mode<synchronous>, transform_indices = @transform_4, window_bounds = array<i64: 3, 3, 128>}, {pipeline_mode = #tpu.pipeline_mode<synchronous>, transform_indices = @transform_5, window_bounds = array<i64: 1, 128>}, {pipeline_mode = #tpu.pipeline_mode<synchronous>, transform_indices = @transform_6, window_bounds = array<i64: 1, 128>}, {pipeline_mode = #tpu.pipeline_mode<synchronous>, transform_indices = @transform_7, window_bounds = array<i64: 128, 4>}, {pipeline_mode = #tpu.pipeline_mode<synchronous>, transform_indices = @transform_8, window_bounds = array<i64: 1, 4>}, {pipeline_mode = #tpu.pipeline_mode<synchronous>, transform_indices = @transform_9, window_bounds = array<i64: 1, 4>}, {transform_indices = @transform_10, window_bounds = array<i64: 1, 8, 16, 4>}]} {
    %c8_i32 = arith.constant 8 : i32
    %0 = arith.muli %arg1, %c8_i32 : i32
    %1 = tpu.assume_multiple %0, 8 : i32
    %c0 = arith.constant 0 : index
    %2 = arith.index_cast %1 : i32 to index
    %c0_0 = arith.constant 0 : index
    %c0_1 = arith.constant 0 : index
    %3 = vector.load %arg2[%c0, %2, %c0_0, %c0_1] : memref<1x18x18x4xf32, #tpu.memory_space<vmem>>, vector<1x10x18x4xf32>
    %4 = vector.shape_cast %3 : vector<1x10x18x4xf32> to vector<10x18x4xf32>
    %5 = vector.shape_cast %4 : vector<10x18x4xf32> to vector<180x4xf32>
    %c0_2 = arith.constant 0 : index
    %c0_3 = arith.constant 0 : index
    %6 = vector.load %arg3[%c0_2, %c0_3] : memref<4x128xf32, #tpu.memory_space<vmem>>, vector<4x128xf32>
    %cst = arith.constant dense<0.000000e+00> : vector<180x128xf32>
    %7 = tpu.matmul %5, %6, %cst {dimension_numbers = #tpu.dot_dimension_numbers<[1], [0], [0], [1], [0, 0, 1, 1], [], []>} : vector<180x4xf32>, vector<4x128xf32>, vector<180x128xf32> -> vector<180x128xf32>
    %c0_4 = arith.constant 0 : index
    %c0_5 = arith.constant 0 : index
    %8 = vector.load %arg4[%c0_4, %c0_5] : memref<1x128xf32, #tpu.memory_space<vmem>>, vector<1x128xf32>
    %9 = vector.broadcast %8 : vector<1x128xf32> to vector<180x128xf32>
    %10 = arith.mulf %7, %9 : vector<180x128xf32>
    %c0_6 = arith.constant 0 : index
    %c0_7 = arith.constant 0 : index
    %11 = vector.load %arg5[%c0_6, %c0_7] : memref<1x128xf32, #tpu.memory_space<vmem>>, vector<1x128xf32>
    %12 = vector.broadcast %11 : vector<1x128xf32> to vector<180x128xf32>
    %13 = arith.addf %10, %12 : vector<180x128xf32>
    %cst_8 = arith.constant 0.000000e+00 : f32
    %cst_9 = arith.constant 6.000000e+00 : f32
    %14 = vector.broadcast %cst_8 : f32 to vector<180x128xf32>
    %15 = arith.maximumf %14, %13 : vector<180x128xf32>
    %16 = vector.broadcast %cst_9 : f32 to vector<180x128xf32>
    %17 = arith.minimumf %16, %15 : vector<180x128xf32>
    %18 = vector.shape_cast %17 : vector<180x128xf32> to vector<10x18x128xf32>
    %19 = tpu.iota {dimensions = array<i32: 0>} : vector<10x18x1xi32>
    %20 = vector.broadcast %1 : i32 to vector<10x18x1xi32>
    %21 = arith.addi %19, %20 : vector<10x18x1xi32>
    %22 = tpu.iota {dimensions = array<i32: 1>} : vector<10x18x1xi32>
    %c1_i32 = arith.constant 1 : i32
    %23 = vector.broadcast %c1_i32 : i32 to vector<10x18x1xi32>
    %24 = arith.cmpi sge, %21, %23 : vector<10x18x1xi32>
    %c16_i32 = arith.constant 16 : i32
    %25 = vector.broadcast %c16_i32 : i32 to vector<10x18x1xi32>
    %26 = arith.cmpi sle, %21, %25 : vector<10x18x1xi32>
    %27 = arith.andi %24, %26 : vector<10x18x1xi1>
    %c1_i32_10 = arith.constant 1 : i32
    %28 = vector.broadcast %c1_i32_10 : i32 to vector<10x18x1xi32>
    %29 = arith.cmpi sge, %22, %28 : vector<10x18x1xi32>
    %30 = arith.andi %27, %29 : vector<10x18x1xi1>
    %c16_i32_11 = arith.constant 16 : i32
    %31 = vector.broadcast %c16_i32_11 : i32 to vector<10x18x1xi32>
    %32 = arith.cmpi sle, %22, %31 : vector<10x18x1xi32>
    %33 = arith.andi %30, %32 : vector<10x18x1xi1>
    %cst_12 = arith.constant 0.000000e+00 : f32
    %34 = vector.shape_cast %33 : vector<10x18x1xi1> to vector<10x18x1xi1>
    %35 = vector.broadcast %34 : vector<10x18x1xi1> to vector<10x18x128xi1>
    %36 = vector.broadcast %cst_12 : f32 to vector<10x18x128xf32>
    %37 = arith.select %35, %18, %36 : vector<10x18x128xi1>, vector<10x18x128xf32>
    %c0_13 = arith.constant 0 : index
    %c0_14 = arith.constant 0 : index
    %c0_15 = arith.constant 0 : index
    %38 = vector.load %arg6[%c0_13, %c0_14, %c0_15] : memref<3x3x128xf32, #tpu.memory_space<vmem>>, vector<3x3x128xf32>
    %cst_16 = arith.constant 0.000000e+00 : f32
    %39 = vector.broadcast %cst_16 : f32 to vector<8x16x128xf32>
    %40 = vector.extract_strided_slice %37 {offsets = [0, 0, 0], sizes = [8, 16, 128], strides = [1, 1, 1]} : vector<10x18x128xf32> to vector<8x16x128xf32>
    %41 = vector.extract_strided_slice %38 {offsets = [0, 0, 0], sizes = [1, 1, 128], strides = [1, 1, 1]} : vector<3x3x128xf32> to vector<1x1x128xf32>
    %42 = vector.shape_cast %41 : vector<1x1x128xf32> to vector<128xf32>
    %43 = vector.shape_cast %42 : vector<128xf32> to vector<1x1x128xf32>
    %44 = vector.broadcast %43 : vector<1x1x128xf32> to vector<8x16x128xf32>
    %45 = arith.mulf %40, %44 : vector<8x16x128xf32>
    %46 = arith.addf %39, %45 : vector<8x16x128xf32>
    %47 = vector.extract_strided_slice %37 {offsets = [0, 1, 0], sizes = [8, 16, 128], strides = [1, 1, 1]} : vector<10x18x128xf32> to vector<8x16x128xf32>
    %48 = vector.extract_strided_slice %38 {offsets = [0, 1, 0], sizes = [1, 1, 128], strides = [1, 1, 1]} : vector<3x3x128xf32> to vector<1x1x128xf32>
    %49 = vector.shape_cast %48 : vector<1x1x128xf32> to vector<128xf32>
    %50 = vector.shape_cast %49 : vector<128xf32> to vector<1x1x128xf32>
    %51 = vector.broadcast %50 : vector<1x1x128xf32> to vector<8x16x128xf32>
    %52 = arith.mulf %47, %51 : vector<8x16x128xf32>
    %53 = arith.addf %46, %52 : vector<8x16x128xf32>
    %54 = vector.extract_strided_slice %37 {offsets = [0, 2, 0], sizes = [8, 16, 128], strides = [1, 1, 1]} : vector<10x18x128xf32> to vector<8x16x128xf32>
    %55 = vector.extract_strided_slice %38 {offsets = [0, 2, 0], sizes = [1, 1, 128], strides = [1, 1, 1]} : vector<3x3x128xf32> to vector<1x1x128xf32>
    %56 = vector.shape_cast %55 : vector<1x1x128xf32> to vector<128xf32>
    %57 = vector.shape_cast %56 : vector<128xf32> to vector<1x1x128xf32>
    %58 = vector.broadcast %57 : vector<1x1x128xf32> to vector<8x16x128xf32>
    %59 = arith.mulf %54, %58 : vector<8x16x128xf32>
    %60 = arith.addf %53, %59 : vector<8x16x128xf32>
    %61 = vector.extract_strided_slice %37 {offsets = [1, 0, 0], sizes = [8, 16, 128], strides = [1, 1, 1]} : vector<10x18x128xf32> to vector<8x16x128xf32>
    %62 = vector.extract_strided_slice %38 {offsets = [1, 0, 0], sizes = [1, 1, 128], strides = [1, 1, 1]} : vector<3x3x128xf32> to vector<1x1x128xf32>
    %63 = vector.shape_cast %62 : vector<1x1x128xf32> to vector<128xf32>
    %64 = vector.shape_cast %63 : vector<128xf32> to vector<1x1x128xf32>
    %65 = vector.broadcast %64 : vector<1x1x128xf32> to vector<8x16x128xf32>
    %66 = arith.mulf %61, %65 : vector<8x16x128xf32>
    %67 = arith.addf %60, %66 : vector<8x16x128xf32>
    %68 = vector.extract_strided_slice %37 {offsets = [1, 1, 0], sizes = [8, 16, 128], strides = [1, 1, 1]} : vector<10x18x128xf32> to vector<8x16x128xf32>
    %69 = vector.extract_strided_slice %38 {offsets = [1, 1, 0], sizes = [1, 1, 128], strides = [1, 1, 1]} : vector<3x3x128xf32> to vector<1x1x128xf32>
    %70 = vector.shape_cast %69 : vector<1x1x128xf32> to vector<128xf32>
    %71 = vector.shape_cast %70 : vector<128xf32> to vector<1x1x128xf32>
    %72 = vector.broadcast %71 : vector<1x1x128xf32> to vector<8x16x128xf32>
    %73 = arith.mulf %68, %72 : vector<8x16x128xf32>
    %74 = arith.addf %67, %73 : vector<8x16x128xf32>
    %75 = vector.extract_strided_slice %37 {offsets = [1, 2, 0], sizes = [8, 16, 128], strides = [1, 1, 1]} : vector<10x18x128xf32> to vector<8x16x128xf32>
    %76 = vector.extract_strided_slice %38 {offsets = [1, 2, 0], sizes = [1, 1, 128], strides = [1, 1, 1]} : vector<3x3x128xf32> to vector<1x1x128xf32>
    %77 = vector.shape_cast %76 : vector<1x1x128xf32> to vector<128xf32>
    %78 = vector.shape_cast %77 : vector<128xf32> to vector<1x1x128xf32>
    %79 = vector.broadcast %78 : vector<1x1x128xf32> to vector<8x16x128xf32>
    %80 = arith.mulf %75, %79 : vector<8x16x128xf32>
    %81 = arith.addf %74, %80 : vector<8x16x128xf32>
    %82 = vector.extract_strided_slice %37 {offsets = [2, 0, 0], sizes = [8, 16, 128], strides = [1, 1, 1]} : vector<10x18x128xf32> to vector<8x16x128xf32>
    %83 = vector.extract_strided_slice %38 {offsets = [2, 0, 0], sizes = [1, 1, 128], strides = [1, 1, 1]} : vector<3x3x128xf32> to vector<1x1x128xf32>
    %84 = vector.shape_cast %83 : vector<1x1x128xf32> to vector<128xf32>
    %85 = vector.shape_cast %84 : vector<128xf32> to vector<1x1x128xf32>
    %86 = vector.broadcast %85 : vector<1x1x128xf32> to vector<8x16x128xf32>
    %87 = arith.mulf %82, %86 : vector<8x16x128xf32>
    %88 = arith.addf %81, %87 : vector<8x16x128xf32>
    %89 = vector.extract_strided_slice %37 {offsets = [2, 1, 0], sizes = [8, 16, 128], strides = [1, 1, 1]} : vector<10x18x128xf32> to vector<8x16x128xf32>
    %90 = vector.extract_strided_slice %38 {offsets = [2, 1, 0], sizes = [1, 1, 128], strides = [1, 1, 1]} : vector<3x3x128xf32> to vector<1x1x128xf32>
    %91 = vector.shape_cast %90 : vector<1x1x128xf32> to vector<128xf32>
    %92 = vector.shape_cast %91 : vector<128xf32> to vector<1x1x128xf32>
    %93 = vector.broadcast %92 : vector<1x1x128xf32> to vector<8x16x128xf32>
    %94 = arith.mulf %89, %93 : vector<8x16x128xf32>
    %95 = arith.addf %88, %94 : vector<8x16x128xf32>
    %96 = vector.extract_strided_slice %37 {offsets = [2, 2, 0], sizes = [8, 16, 128], strides = [1, 1, 1]} : vector<10x18x128xf32> to vector<8x16x128xf32>
    %97 = vector.extract_strided_slice %38 {offsets = [2, 2, 0], sizes = [1, 1, 128], strides = [1, 1, 1]} : vector<3x3x128xf32> to vector<1x1x128xf32>
    %98 = vector.shape_cast %97 : vector<1x1x128xf32> to vector<128xf32>
    %99 = vector.shape_cast %98 : vector<128xf32> to vector<1x1x128xf32>
    %100 = vector.broadcast %99 : vector<1x1x128xf32> to vector<8x16x128xf32>
    %101 = arith.mulf %96, %100 : vector<8x16x128xf32>
    %102 = arith.addf %95, %101 : vector<8x16x128xf32>
    %c0_17 = arith.constant 0 : index
    %c0_18 = arith.constant 0 : index
    %103 = vector.load %arg7[%c0_17, %c0_18] : memref<1x128xf32, #tpu.memory_space<vmem>>, vector<1x128xf32>
    %104 = vector.shape_cast %103 : vector<1x128xf32> to vector<1x1x128xf32>
    %105 = vector.broadcast %104 : vector<1x1x128xf32> to vector<8x16x128xf32>
    %106 = arith.mulf %102, %105 : vector<8x16x128xf32>
    %c0_19 = arith.constant 0 : index
    %c0_20 = arith.constant 0 : index
    %107 = vector.load %arg8[%c0_19, %c0_20] : memref<1x128xf32, #tpu.memory_space<vmem>>, vector<1x128xf32>
    %108 = vector.shape_cast %107 : vector<1x128xf32> to vector<1x1x128xf32>
    %109 = vector.broadcast %108 : vector<1x1x128xf32> to vector<8x16x128xf32>
    %110 = arith.addf %106, %109 : vector<8x16x128xf32>
    %cst_21 = arith.constant 0.000000e+00 : f32
    %cst_22 = arith.constant 6.000000e+00 : f32
    %111 = vector.broadcast %cst_21 : f32 to vector<8x16x128xf32>
    %112 = arith.maximumf %111, %110 : vector<8x16x128xf32>
    %113 = vector.broadcast %cst_22 : f32 to vector<8x16x128xf32>
    %114 = arith.minimumf %113, %112 : vector<8x16x128xf32>
    %115 = vector.shape_cast %114 : vector<8x16x128xf32> to vector<128x128xf32>
    %c0_23 = arith.constant 0 : index
    %c0_24 = arith.constant 0 : index
    %116 = vector.load %arg9[%c0_23, %c0_24] : memref<128x4xf32, #tpu.memory_space<vmem>>, vector<128x4xf32>
    %cst_25 = arith.constant dense<0.000000e+00> : vector<128x4xf32>
    %117 = tpu.matmul %115, %116, %cst_25 {dimension_numbers = #tpu.dot_dimension_numbers<[1], [0], [0], [1], [0, 0, 1, 1], [], []>} : vector<128x128xf32>, vector<128x4xf32>, vector<128x4xf32> -> vector<128x4xf32>
    %c0_26 = arith.constant 0 : index
    %c0_27 = arith.constant 0 : index
    %118 = vector.load %arg10[%c0_26, %c0_27] : memref<1x4xf32, #tpu.memory_space<vmem>>, vector<1x4xf32>
    %119 = vector.broadcast %118 : vector<1x4xf32> to vector<128x4xf32>
    %120 = arith.mulf %117, %119 : vector<128x4xf32>
    %c0_28 = arith.constant 0 : index
    %c0_29 = arith.constant 0 : index
    %121 = vector.load %arg11[%c0_28, %c0_29] : memref<1x4xf32, #tpu.memory_space<vmem>>, vector<1x4xf32>
    %122 = vector.broadcast %121 : vector<1x4xf32> to vector<128x4xf32>
    %123 = arith.addf %120, %122 : vector<128x4xf32>
    %124 = vector.shape_cast %123 : vector<128x4xf32> to vector<8x16x4xf32>
    %125 = vector.extract_strided_slice %4 {offsets = [1, 1, 0], sizes = [8, 16, 4], strides = [1, 1, 1]} : vector<10x18x4xf32> to vector<8x16x4xf32>
    %126 = arith.addf %124, %125 : vector<8x16x4xf32>
    %c0_30 = arith.constant 0 : index
    %c0_31 = arith.constant 0 : index
    %c0_32 = arith.constant 0 : index
    %c0_33 = arith.constant 0 : index
    %127 = vector.load %arg12[%c0_30, %c0_31, %c0_32, %c0_33] : memref<1x8x16x4xf32, #tpu.memory_space<vmem>>, vector<1x8x16x4xf32>
    %128 = vector.shape_cast %127 : vector<1x8x16x4xf32> to vector<8x16x4xf32>
    %129 = vector.shape_cast %126 : vector<8x16x4xf32> to vector<1x8x16x4xf32>
    tpu.vector_store %arg12[%c0_30, %c0_31, %c0_32, %c0_33], %129 {strides = array<i32>} : memref<1x8x16x4xf32, #tpu.memory_space<vmem>>, vector<1x8x16x4xf32>,
    return
  }
  func.func @transform_0(%arg0: i32, %arg1: i32) -> (i32, i32, i32, i32) {
    %c0_i32 = arith.constant 0 : i32
    %c0_i32_0 = arith.constant 0 : i32
    %c0_i32_1 = arith.constant 0 : i32
    %c0_i32_2 = arith.constant 0 : i32
    return %arg0, %c0_i32, %c0_i32_0, %c0_i32_1 : i32, i32, i32, i32
  }
  func.func @transform_1(%arg0: i32, %arg1: i32) -> (i32, i32) {
    %c0_i32 = arith.constant 0 : i32
    %c0_i32_0 = arith.constant 0 : i32
    %c0_i32_1 = arith.constant 0 : i32
    return %c0_i32, %c0_i32_0 : i32, i32
  }
  func.func @transform_2(%arg0: i32, %arg1: i32) -> (i32, i32) {
    %c0_i32 = arith.constant 0 : i32
    %c0_i32_0 = arith.constant 0 : i32
    %c0_i32_1 = arith.constant 0 : i32
    return %c0_i32, %c0_i32_0 : i32, i32
  }
  func.func @transform_3(%arg0: i32, %arg1: i32) -> (i32, i32) {
    %c0_i32 = arith.constant 0 : i32
    %c0_i32_0 = arith.constant 0 : i32
    %c0_i32_1 = arith.constant 0 : i32
    return %c0_i32, %c0_i32_0 : i32, i32
  }
  func.func @transform_4(%arg0: i32, %arg1: i32) -> (i32, i32, i32) {
    %c0_i32 = arith.constant 0 : i32
    %c0_i32_0 = arith.constant 0 : i32
    %c0_i32_1 = arith.constant 0 : i32
    %c0_i32_2 = arith.constant 0 : i32
    return %c0_i32, %c0_i32_0, %c0_i32_1 : i32, i32, i32
  }
  func.func @transform_5(%arg0: i32, %arg1: i32) -> (i32, i32) {
    %c0_i32 = arith.constant 0 : i32
    %c0_i32_0 = arith.constant 0 : i32
    %c0_i32_1 = arith.constant 0 : i32
    return %c0_i32, %c0_i32_0 : i32, i32
  }
  func.func @transform_6(%arg0: i32, %arg1: i32) -> (i32, i32) {
    %c0_i32 = arith.constant 0 : i32
    %c0_i32_0 = arith.constant 0 : i32
    %c0_i32_1 = arith.constant 0 : i32
    return %c0_i32, %c0_i32_0 : i32, i32
  }
  func.func @transform_7(%arg0: i32, %arg1: i32) -> (i32, i32) {
    %c0_i32 = arith.constant 0 : i32
    %c0_i32_0 = arith.constant 0 : i32
    %c0_i32_1 = arith.constant 0 : i32
    return %c0_i32, %c0_i32_0 : i32, i32
  }
  func.func @transform_8(%arg0: i32, %arg1: i32) -> (i32, i32) {
    %c0_i32 = arith.constant 0 : i32
    %c0_i32_0 = arith.constant 0 : i32
    %c0_i32_1 = arith.constant 0 : i32
    return %c0_i32, %c0_i32_0 : i32, i32
  }
  func.func @transform_9(%arg0: i32, %arg1: i32) -> (i32, i32) {
    %c0_i32 = arith.constant 0 : i32
    %c0_i32_0 = arith.constant 0 : i32
    %c0_i32_1 = arith.constant 0 : i32
    return %c0_i32, %c0_i32_0 : i32, i32
  }
  func.func @transform_10(%arg0: i32, %arg1: i32) -> (i32, i32, i32, i32) {
    %c0_i32 = arith.constant 0 : i32
    %c0_i32_0 = arith.constant 0 : i32
    %c0_i32_1 = arith.constant 0 : i32
    return %arg0, %arg1, %c0_i32, %c0_i32_0 : i32, i32, i32, i32
  }
}

</mosaic_0001>

<llo_original>
// kernel: inverted_residual_forward.1
$region0: #{inverted_residual_forward.1}
  #allocation0 [shape = 'u32[]', space=smem, size = 0x4, offset = 0x4, fixed_abs, tag = 'smem constant byte address 0x4 - core index']
  #allocation1 [shape = 'u32[72,128]{1,0:T(1,128)}', space=vmem, size = 0x9000, scoped, tag = 'internal scratch']
  %s0 = inlined_call_operand.vmem [shape: f32[2,18,18,4], index: 0, kind: input, shape index: {}]
  %s1 = inlined_call_operand.vmem [shape: f32[4,128], index: 1, kind: input, shape index: {}]
  %s2 = inlined_call_operand.vmem [shape: f32[1,128], index: 2, kind: input, shape index: {}]
  %s3 = inlined_call_operand.vmem [shape: f32[1,128], index: 3, kind: input, shape index: {}]
  %s4 = inlined_call_operand.vmem [shape: f32[3,3,128], index: 4, kind: input, shape index: {}]
  %s5 = inlined_call_operand.vmem [shape: f32[1,128], index: 5, kind: input, shape index: {}]
  %s6 = inlined_call_operand.vmem [shape: f32[1,128], index: 6, kind: input, shape index: {}]
  %s7 = inlined_call_operand.vmem [shape: f32[128,4], index: 7, kind: input, shape index: {}]
  %s8 = inlined_call_operand.vmem [shape: f32[1,4], index: 8, kind: input, shape index: {}]
  %s9 = inlined_call_operand.vmem [shape: f32[1,4], index: 9, kind: input, shape index: {}]
  %s10 = inlined_call_operand.vmem [shape: f32[2,16,16,4], index: 10, kind: output, shape index: {}]
  %s11 = sld [smem:[#allocation0]]
  $region73: #{inverted_residual_forward.1} parent=0
    _
  %s13 = ssub.s32 1, %s11
  %s14 = scalar_select 0, %s13, %s11
  loop: start=0, step=1, limit=6
  $region2: #{inverted_residual_forward.1} parent=0 // loop_pre_header
    _
  $region3: #{inverted_residual_forward.1} parent=0 // loop_header
    %s16 = sphi 0, %s20
    %p17 = scmp.ge.s32.totalorder %s16, 6
    %s23 = sphi 0, %s35
    %s24 = sphi 0, %s31
    %s25 = sphi 0, %s23
    %s26 = sphi 0, %s24
    %s27 = sphi 0, %s25
    %s28 = sphi 0, %s26
    %s38 = sphi 0, %s40
    %s41 = sphi 0, %s38
    %s42 = sphi 0, %s41
    %s58 = sphi 0, %s42
    %s62 = sphi 0, %s62
    %s64 = sphi 0, %s62
    %s65 = sphi 0, %s64
    %s79 = sphi 0, %s65
    %s83 = sphi 0, %s83
    %s85 = sphi 0, %s83
    %s86 = sphi 0, %s85
    %s100 = sphi 0, %s86
    %s104 = sphi 0, %s104
    %s106 = sphi 0, %s104
    %s107 = sphi 0, %s106
    %s121 = sphi 0, %s107
    %s125 = sphi 0, %s125
    %s127 = sphi 0, %s125
    %s128 = sphi 0, %s127
    %s142 = sphi 0, %s128
    %s146 = sphi 0, %s146
    %s148 = sphi 0, %s146
    %s149 = sphi 0, %s148
    %s163 = sphi 0, %s149
    %s167 = sphi 0, %s167
    %s169 = sphi 0, %s167
    %s170 = sphi 0, %s169
    %s184 = sphi 0, %s170
    %s188 = sphi 0, %s188
    %s190 = sphi 0, %s188
    %s191 = sphi 0, %s190
    %s205 = sphi 0, %s191
    %s209 = sphi 0, %s209
    %s211 = sphi 0, %s209
    %s212 = sphi 0, %s211
    %s226 = sphi 0, %s212
    %s230 = sphi 0, %s230
    %s232 = sphi 0, %s230
    %s233 = sphi 0, %s232
    %s247 = sphi 0, %s233
    %s255 = sphi 0, %s257
    %s258 = sphi 0, %s255
    %s259 = sphi 0, %s258
    %s275 = sphi 0, %s259
  $region4: #{inverted_residual_forward.1} parent=0 // loop_header_branch
    %19 = sbr.rel (%p17) target = $region8
  $region5: #{inverted_residual_forward.1} parent=0 // loop_body
    %s21 = ssub.s32 %s16, 1
    %s22 = ssub.s32 %s16, 2
    %s29 = sadd.s32 1, %s24
    %p30 = scmp.ge.s32.totalorder %s29, 2
    %s31 = scalar_select %p30, 0, %s29
    %s32 = sadd.s32 1, %s23
    %s33 = scalar_select %p30, %s32, %s23
    %p34 = scmp.ge.s32.totalorder %s33, 2
    %s35 = scalar_select %p34, 0, %s33
    %s36 = ssub.s32 %s23, %s35
    %p37 = scmp.eq.s32.totalorder %s36, 0
    %s39 = sadd.s32 %s38, 1
    %s40 = scalar_select %p37, %s38, %s39
    %p43 = pneg %p37
    %p44 = scmp.eq.s32.totalorder %s16, 3
    %p45 = por %p43, %p44
    %p46 = scmp.ne.s32.totalorder %s38, %s41
    %p47 = scmp.eq.s32.totalorder %s16, 0
    %p48 = por %p46, %p47
    %p49 = scmp.ne.s32.totalorder %s38, %s41
    %p50 = scmp.eq.s32.totalorder %s21, 3
    %p51 = por %p49, %p50
    %p52 = scmp.ne.s32.totalorder %s41, %s42
    %p53 = scmp.eq.s32.totalorder %s21, 0
    %p54 = por %p52, %p53
    %p55 = scmp.ne.s32.totalorder %s41, %s42
    %p56 = scmp.eq.s32.totalorder %s22, 3
    %p57 = por %p55, %p56
    %p59 = scmp.ne.s32.totalorder %s42, %s58
    %p60 = scmp.eq.s32.totalorder %s22, 0
    %p61 = por %p59, %p60
    %s63 = sadd.s32 %s62, 1
    %p66 = scmp.eq.s32.totalorder %s16, 3
    %p67 = scmp.ne.s32.totalorder %s62, %s64
    %p68 = scmp.eq.s32.totalorder %s16, 0
    %p69 = por %p67, %p68
    %p70 = scmp.ne.s32.totalorder %s62, %s64
    %p71 = scmp.eq.s32.totalorder %s21, 3
    %p72 = por %p70, %p71
    %p73 = scmp.ne.s32.totalorder %s64, %s65
    %p74 = scmp.eq.s32.totalorder %s21, 0
    %p75 = por %p73, %p74
    %p76 = scmp.ne.s32.totalorder %s64, %s65
    %p77 = scmp.eq.s32.totalorder %s22, 3
    %p78 = por %p76, %p77
    %p80 = scmp.ne.s32.totalorder %s65, %s79
    %p81 = scmp.eq.s32.totalorder %s22, 0
    %p82 = por %p80, %p81
    %s84 = sadd.s32 %s83, 1
    %p87 = scmp.eq.s32.totalorder %s16, 3
    %p88 = scmp.ne.s32.totalorder %s83, %s85
    %p89 = scmp.eq.s32.totalorder %s16, 0
    %p90 = por %p88, %p89
    %p91 = scmp.ne.s32.totalorder %s83, %s85
    %p92 = scmp.eq.s32.totalorder %s21, 3
    %p93 = por %p91, %p92
    %p94 = scmp.ne.s32.totalorder %s85, %s86
    %p95 = scmp.eq.s32.totalorder %s21, 0
    %p96 = por %p94, %p95
    %p97 = scmp.ne.s32.totalorder %s85, %s86
    %p98 = scmp.eq.s32.totalorder %s22, 3
    %p99 = por %p97, %p98
    %p101 = scmp.ne.s32.totalorder %s86, %s100
    %p102 = scmp.eq.s32.totalorder %s22, 0
    %p103 = por %p101, %p102
    %s105 = sadd.s32 %s104, 1
    %p108 = scmp.eq.s32.totalorder %s16, 3
    %p109 = scmp.ne.s32.totalorder %s104, %s106
    %p110 = scmp.eq.s32.totalorder %s16, 0
    %p111 = por %p109, %p110
    %p112 = scmp.ne.s32.totalorder %s104, %s106
    %p113 = scmp.eq.s32.totalorder %s21, 3
    %p114 = por %p112, %p113
    %p115 = scmp.ne.s32.totalorder %s106, %s107
    %p116 = scmp.eq.s32.totalorder %s21, 0
    %p117 = por %p115, %p116
    %p118 = scmp.ne.s32.totalorder %s106, %s107
    %p119 = scmp.eq.s32.totalorder %s22, 3
    %p120 = por %p118, %p119
    %p122 = scmp.ne.s32.totalorder %s107, %s121
    %p123 = scmp.eq.s32.totalorder %s22, 0
    %p124 = por %p122, %p123
    %s126 = sadd.s32 %s125, 1
    %p129 = scmp.eq.s32.totalorder %s16, 3
    %p130 = scmp.ne.s32.totalorder %s125, %s127
    %p131 = scmp.eq.s32.totalorder %s16, 0
    %p132 = por %p130, %p131
    %p133 = scmp.ne.s32.totalorder %s125, %s127
    %p134 = scmp.eq.s32.totalorder %s21, 3
    %p135 = por %p133, %p134
    %p136 = scmp.ne.s32.totalorder %s127, %s128
    %p137 = scmp.eq.s32.totalorder %s21, 0
    %p138 = por %p136, %p137
    %p139 = scmp.ne.s32.totalorder %s127, %s128
    %p140 = scmp.eq.s32.totalorder %s22, 3
    %p141 = por %p139, %p140
    %p143 = scmp.ne.s32.totalorder %s128, %s142
    %p144 = scmp.eq.s32.totalorder %s22, 0
    %p145 = por %p143, %p144
    %s147 = sadd.s32 %s146, 1
    %p150 = scmp.eq.s32.totalorder %s16, 3
    %p151 = scmp.ne.s32.totalorder %s146, %s148
    %p152 = scmp.eq.s32.totalorder %s16, 0
    %p153 = por %p151, %p152
    %p154 = scmp.ne.s32.totalorder %s146, %s148
    %p155 = scmp.eq.s32.totalorder %s21, 3
    %p156 = por %p154, %p155
    %p157 = scmp.ne.s32.totalorder %s148, %s149
    %p158 = scmp.eq.s32.totalorder %s21, 0
    %p159 = por %p157, %p158
    %p160 = scmp.ne.s32.totalorder %s148, %s149
    %p161 = scmp.eq.s32.totalorder %s22, 3
    %p162 = por %p160, %p161
    %p164 = scmp.ne.s32.totalorder %s149, %s163
    %p165 = scmp.eq.s32.totalorder %s22, 0
    %p166 = por %p164, %p165
    %s168 = sadd.s32 %s167, 1
    %p171 = scmp.eq.s32.totalorder %s16, 3
    %p172 = scmp.ne.s32.totalorder %s167, %s169
    %p173 = scmp.eq.s32.totalorder %s16, 0
    %p174 = por %p172, %p173
    %p175 = scmp.ne.s32.totalorder %s167, %s169
    %p176 = scmp.eq.s32.totalorder %s21, 3
    %p177 = por %p175, %p176
    %p178 = scmp.ne.s32.totalorder %s169, %s170
    %p179 = scmp.eq.s32.totalorder %s21, 0
    %p180 = por %p178, %p179
    %p181 = scmp.ne.s32.totalorder %s169, %s170
    %p182 = scmp.eq.s32.totalorder %s22, 3
    %p183 = por %p181, %p182
    %p185 = scmp.ne.s32.totalorder %s170, %s184
    %p186 = scmp.eq.s32.totalorder %s22, 0
    %p187 = por %p185, %p186
    %s189 = sadd.s32 %s188, 1
    %p192 = scmp.eq.s32.totalorder %s16, 3
    %p193 = scmp.ne.s32.totalorder %s188, %s190
    %p194 = scmp.eq.s32.totalorder %s16, 0
    %p195 = por %p193, %p194
    %p196 = scmp.ne.s32.totalorder %s188, %s190
    %p197 = scmp.eq.s32.totalorder %s21, 3
    %p198 = por %p196, %p197
    %p199 = scmp.ne.s32.totalorder %s190, %s191
    %p200 = scmp.eq.s32.totalorder %s21, 0
    %p201 = por %p199, %p200
    %p202 = scmp.ne.s32.totalorder %s190, %s191
    %p203 = scmp.eq.s32.totalorder %s22, 3
    %p204 = por %p202, %p203
    %p206 = scmp.ne.s32.totalorder %s191, %s205
    %p207 = scmp.eq.s32.totalorder %s22, 0
    %p208 = por %p206, %p207
    %s210 = sadd.s32 %s209, 1
    %p213 = scmp.eq.s32.totalorder %s16, 3
    %p214 = scmp.ne.s32.totalorder %s209, %s211
    %p215 = scmp.eq.s32.totalorder %s16, 0
    %p216 = por %p214, %p215
    %p217 = scmp.ne.s32.totalorder %s209, %s211
    %p218 = scmp.eq.s32.totalorder %s21, 3
    %p219 = por %p217, %p218
    %p220 = scmp.ne.s32.totalorder %s211, %s212
    %p221 = scmp.eq.s32.totalorder %s21, 0
    %p222 = por %p220, %p221
    %p223 = scmp.ne.s32.totalorder %s211, %s212
    %p224 = scmp.eq.s32.totalorder %s22, 3
    %p225 = por %p223, %p224
    %p227 = scmp.ne.s32.totalorder %s212, %s226
    %p228 = scmp.eq.s32.totalorder %s22, 0
    %p229 = por %p227, %p228
    %s231 = sadd.s32 %s230, 1
    %p234 = scmp.eq.s32.totalorder %s16, 3
    %p235 = scmp.ne.s32.totalorder %s230, %s232
    %p236 = scmp.eq.s32.totalorder %s16, 0
    %p237 = por %p235, %p236
    %p238 = scmp.ne.s32.totalorder %s230, %s232
    %p239 = scmp.eq.s32.totalorder %s21, 3
    %p240 = por %p238, %p239
    %p241 = scmp.ne.s32.totalorder %s232, %s233
    %p242 = scmp.eq.s32.totalorder %s21, 0
    %p243 = por %p241, %p242
    %p244 = scmp.ne.s32.totalorder %s232, %s233
    %p245 = scmp.eq.s32.totalorder %s22, 3
    %p246 = por %p244, %p245
    %p248 = scmp.ne.s32.totalorder %s233, %s247
    %p249 = scmp.eq.s32.totalorder %s22, 0
    %p250 = por %p248, %p249
    %s251 = ssub.s32 %s23, %s35
    %s252 = ssub.s32 %s24, %s31
    %s253 = sor.u32 %s251, %s252
    %p254 = scmp.eq.s32.totalorder %s253, 0
    %s256 = sadd.s32 %s255, 1
    %s257 = scalar_select %p254, %s255, %s256
    %p260 = pneg %p254
    %p261 = scmp.eq.s32.totalorder %s16, 3
    %p262 = por %p260, %p261
    %p263 = scmp.ne.s32.totalorder %s255, %s258
    %p264 = scmp.eq.s32.totalorder %s16, 0
    %p265 = por %p263, %p264
    %p266 = scmp.ne.s32.totalorder %s255, %s258
    %p267 = scmp.eq.s32.totalorder %s21, 3
    %p268 = por %p266, %p267
    %p269 = scmp.ne.s32.totalorder %s258, %s259
    %p270 = scmp.eq.s32.totalorder %s21, 0
    %p271 = por %p269, %p270
    %p272 = scmp.ne.s32.totalorder %s258, %s259
    %p273 = scmp.eq.s32.totalorder %s22, 3
    %p274 = por %p272, %p273
    %p276 = scmp.ne.s32.totalorder %s259, %s275
    %p277 = scmp.eq.s32.totalorder %s22, 0
    %p278 = por %p276, %p277
    %p279 = scmp.le.s32.totalorder 1, %s16
    %p280 = scmp.lt.s32.totalorder %s16, 5
    %p281 = pnand %p279, %p280
    %p282 = pneg %p281
    // Predicated region
    $region9: #{inverted_residual_forward.1} parent=5 // pred_check
      _
    $region10: #{inverted_residual_forward.1} parent=5 // pred_check_branch
      %284 = sbr.rel (%p281) target = $region12
    $region11: #{inverted_residual_forward.1} parent=5 // pred_region
      %s285 = ssub.s32 %s16, 1
      // Predicated region
      $region13: #{inverted_residual_forward.1} parent=11 // pred_check
        %p286 = pneg %p75
      $region14: #{inverted_residual_forward.1} parent=11 // pred_check_branch
        %288 = sbr.rel (%p286) target = $region16
      $region15: #{inverted_residual_forward.1} parent=11 // pred_region
        _
      $region16: #{inverted_residual_forward.1} parent=11 // pred_fallthru
        _
      // Predicated region
      $region17: #{inverted_residual_forward.1} parent=11 // pred_check
        %p289 = pneg %p96
      $region18: #{inverted_residual_forward.1} parent=11 // pred_check_branch
        %291 = sbr.rel (%p289) target = $region20
      $region19: #{inverted_residual_forward.1} parent=11 // pred_region
        _
      $region20: #{inverted_residual_forward.1} parent=11 // pred_fallthru
        _
      // Predicated region
      $region21: #{inverted_residual_forward.1} parent=11 // pred_check
        %p292 = pneg %p117
      $region22: #{inverted_residual_forward.1} parent=11 // pred_check_branch
        %294 = sbr.rel (%p292) target = $region24
      $region23: #{inverted_residual_forward.1} parent=11 // pred_region
        _
      $region24: #{inverted_residual_forward.1} parent=11 // pred_fallthru
        _
      // Predicated region
      $region25: #{inverted_residual_forward.1} parent=11 // pred_check
        %p295 = pneg %p138
      $region26: #{inverted_residual_forward.1} parent=11 // pred_check_branch
        %297 = sbr.rel (%p295) target = $region28
      $region27: #{inverted_residual_forward.1} parent=11 // pred_region
        _
      $region28: #{inverted_residual_forward.1} parent=11 // pred_fallthru
        _
      // Predicated region
      $region29: #{inverted_residual_forward.1} parent=11 // pred_check
        %p298 = pneg %p159
      $region30: #{inverted_residual_forward.1} parent=11 // pred_check_branch
        %300 = sbr.rel (%p298) target = $region32
      $region31: #{inverted_residual_forward.1} parent=11 // pred_region
        _
      $region32: #{inverted_residual_forward.1} parent=11 // pred_fallthru
        _
      // Predicated region
      $region33: #{inverted_residual_forward.1} parent=11 // pred_check
        %p301 = pneg %p180
      $region34: #{inverted_residual_forward.1} parent=11 // pred_check_branch
        %303 = sbr.rel (%p301) target = $region36
      $region35: #{inverted_residual_forward.1} parent=11 // pred_region
        _
      $region36: #{inverted_residual_forward.1} parent=11 // pred_fallthru
        _
      // Predicated region
      $region37: #{inverted_residual_forward.1} parent=11 // pred_check
        %p304 = pneg %p201
      $region38: #{inverted_residual_forward.1} parent=11 // pred_check_branch
        %306 = sbr.rel (%p304) target = $region40
      $region39: #{inverted_residual_forward.1} parent=11 // pred_region
        _
      $region40: #{inverted_residual_forward.1} parent=11 // pred_fallthru
        _
      // Predicated region
      $region41: #{inverted_residual_forward.1} parent=11 // pred_check
        %p307 = pneg %p222
      $region42: #{inverted_residual_forward.1} parent=11 // pred_check_branch
        %309 = sbr.rel (%p307) target = $region44
      $region43: #{inverted_residual_forward.1} parent=11 // pred_region
        _
      $region44: #{inverted_residual_forward.1} parent=11 // pred_fallthru
        _
      // Predicated region
      $region45: #{inverted_residual_forward.1} parent=11 // pred_check
        %p310 = pneg %p243
      $region46: #{inverted_residual_forward.1} parent=11 // pred_check_branch
        %312 = sbr.rel (%p310) target = $region48
      $region47: #{inverted_residual_forward.1} parent=11 // pred_region
        _
      $region48: #{inverted_residual_forward.1} parent=11 // pred_fallthru
        _
    $region12: #{inverted_residual_forward.1} parent=5 // pred_fallthru
      _
    %p313 = scmp.lt.s32.totalorder %s16, 4
    // Predicated region
    $region49: #{inverted_residual_forward.1} parent=5 // pred_check
      %p314 = pneg %p313
    $region50: #{inverted_residual_forward.1} parent=5 // pred_check_branch
      %316 = sbr.rel (%p314) target = $region52
    $region51: #{inverted_residual_forward.1} parent=5 // pred_region
      // Predicated region
      $region53: #{inverted_residual_forward.1} parent=51 // pred_check
        %p317 = pneg %p48
      $region54: #{inverted_residual_forward.1} parent=51 // pred_check_branch
        %319 = sbr.rel (%p317) target = $region56
      $region55: #{inverted_residual_forward.1} parent=51 // pred_region
        %p320 = scmp.lt.s32.totalorder %s23, 1
        %s321 = scalar_select %p320, %s23, 1
        %s322 = smul.addr %s321, 54
        %s323 = smul.addr %s322, 8
        %s324 = scalar_lea.vmem %s0, %s323
      $region56: #{inverted_residual_forward.1} parent=51 // pred_fallthru
        _
    $region52: #{inverted_residual_forward.1} parent=5 // pred_fallthru
      _
    %p325 = scmp.le.s32.totalorder 1, %s16
    %p326 = scmp.lt.s32.totalorder %s16, 5
    %p327 = pnand %p325, %p326
    %p328 = pneg %p327
    // Predicated region
    $region57: #{inverted_residual_forward.1} parent=5 // pred_check
      _
    $region58: #{inverted_residual_forward.1} parent=5 // pred_check_branch
      %330 = sbr.rel (%p327) target = $region60
    $region59: #{inverted_residual_forward.1} parent=5 // pred_region
      %s331 = ssub.s32 %s16, 1
      %p332 = scmp.lt.s32.totalorder %s25, 1
      %s333 = scalar_select %p332, %s25, 1
      %s334 = smul.addr %s333, 54
      %s335 = smul.addr %s334, 8
      %s336 = scalar_lea.vmem %s0, %s335
      %p337 = pneg %p54
      %p338 = pneg %p51
      %p339 = pneg %p75
      %p340 = pneg %p72
      %p341 = pneg %p96
      %p342 = pneg %p93
      %p343 = pneg %p117
      %p344 = pneg %p114
      %p345 = pneg %p138
      %p346 = pneg %p135
      %p347 = pneg %p159
      %p348 = pneg %p156
      %p349 = pneg %p180
      %p350 = pneg %p177
      %p351 = pneg %p201
      %p352 = pneg %p198
      %p353 = pneg %p222
      %p354 = pneg %p219
      %p355 = pneg %p243
      %p356 = pneg %p240
      %p357 = pneg %p271
      %p358 = pneg %p268
      %s359 = smul.u32 8, %s26
      %p360 = scmp.lt.s32.totalorder %s25, 1
      %s361 = scalar_select %p360, %s25, 1
      %p362 = scmp.lt.s32.totalorder %s359, 15
      %s363 = scalar_select %p362, %s359, 15
      %s364 = smul.addr %s363, 2
      %s365 = smul.addr %s361, 32
      %s366 = sadd.s32 %s364, %s365
      %s367 = smul.addr %s366, 8
      %s368 = scalar_lea.vmem %s10, %s367
      %p369 = scmp.lt.s32.totalorder %s25, 1
      %s370 = scalar_select %p369, %s25, 1
      %s371 = smul.addr %s370, 54
      %s372 = smul.addr %s371, 8
      %s373 = scalar_lea.vmem %s0, %s372
      %s374 = smul.u32 8, %s26
      %p375 = scmp.lt.s32.totalorder %s25, 1
      %s376 = scalar_select %p375, %s25, 1
      %p377 = scmp.lt.s32.totalorder %s374, 15
      %s378 = scalar_select %p377, %s374, 15
      %s379 = smul.addr %s378, 2
      %s380 = smul.addr %s376, 32
      %s381 = sadd.s32 %s379, %s380
      %s382 = smul.addr %s381, 8
      %s383 = scalar_lea.vmem %s10, %s382
      %s384 = smul.u32 8, %s26
      %s385 = smul.u32 %s26, 8
      %s386 = smul.u32 %s385, 24
      %s387 = scalar_lea.vmem %s373, %s386
      %v388 = vld [vmem:[%s387] sm:$0xff]
      %v389 = vld [vmem:[%s387 + $0x8] sm:$0xff]
      %v390 = vld [vmem:[%s387 + $0x10] sm:$0x3]
      %v391 = vld [vmem:[%s387 + $0x18] sm:$0xff]
      %v392 = vld [vmem:[%s387 + $0x20] sm:$0xff]
      %v393 = vld [vmem:[%s387 + $0x28] sm:$0x3]
      %v394 = vld [vmem:[%s387 + $0x30] sm:$0xff]
      %v395 = vld [vmem:[%s387 + $0x38] sm:$0xff]
      %v396 = vld [vmem:[%s387 + $0x40] sm:$0x3]
      %v397 = vld [vmem:[%s387 + $0x48] sm:$0xff]
      %v398 = vld [vmem:[%s387 + $0x50] sm:$0xff]
      %v399 = vld [vmem:[%s387 + $0x58] sm:$0x3]
      %v400 = vld [vmem:[%s387 + $0x60] sm:$0xff]
      %v401 = vld [vmem:[%s387 + $0x68] sm:$0xff]
      %v402 = vld [vmem:[%s387 + $0x70] sm:$0x3]
      %v403 = vld [vmem:[%s387 + $0x78] sm:$0xff]
      %v404 = vld [vmem:[%s387 + $0x80] sm:$0xff]
      %v405 = vld [vmem:[%s387 + $0x88] sm:$0x3]
      %v406 = vld [vmem:[%s387 + $0x90] sm:$0xff]
      %v407 = vld [vmem:[%s387 + $0x98] sm:$0xff]
      %v408 = vld [vmem:[%s387 + $0xa0] sm:$0x3]
      %v409 = vld [vmem:[%s387 + $0xa8] sm:$0xff]
      %v410 = vld [vmem:[%s387 + $0xb0] sm:$0xff]
      %v411 = vld [vmem:[%s387 + $0xb8] sm:$0x3]
      %v412 = vld [vmem:[%s387 + $0xc0] sm:$0xff]
      %v413 = vld [vmem:[%s387 + $0xc8] sm:$0xff]
      %v414 = vld [vmem:[%s387 + $0xd0] sm:$0x3]
      %v415 = vld [vmem:[%s387 + $0xd8] sm:$0xff]
      %v416 = vld [vmem:[%s387 + $0xe0] sm:$0xff]
      %v417 = vld [vmem:[%s387 + $0xe8] sm:$0x3]
      %v448 = vrot.slane %v388, 2
      %v449 = vrot.slane %v388, 4
      %v450 = vrot.slane %v388, 6
      %v451 = vrot.slane %v389, 2
      %v452 = vrot.slane %v389, 4
      %v453 = vrot.slane %v389, 6
      %v454 = vrot.slane %v391, 2
      %v455 = vrot.slane %v391, 4
      %v456 = vrot.slane %v391, 6
      %v457 = vrot.slane %v392, 2
      %v458 = vrot.slane %v392, 4
      %v459 = vrot.slane %v392, 6
      %v460 = vrot.slane %v394, 2
      %v461 = vrot.slane %v394, 4
      %v462 = vrot.slane %v394, 6
      %v463 = vrot.slane %v395, 2
      %v464 = vrot.slane %v395, 4
      %v465 = vrot.slane %v395, 6
      %v466 = vrot.slane %v397, 2
      %v467 = vrot.slane %v397, 4
      %v468 = vrot.slane %v397, 6
      %v469 = vrot.slane %v398, 2
      %v470 = vrot.slane %v398, 4
      %v471 = vrot.slane %v398, 6
      %v472 = vrot.slane %v400, 2
      %v473 = vrot.slane %v400, 4
      %v474 = vrot.slane %v400, 6
      %v475 = vrot.slane %v401, 2
      %v476 = vrot.slane %v401, 4
      %v477 = vrot.slane %v401, 6
      %v478 = vrot.slane %v403, 2
      %v479 = vrot.slane %v403, 4
      %v480 = vrot.slane %v403, 6
      %v481 = vrot.slane %v404, 2
      %v482 = vrot.slane %v404, 4
      %v483 = vrot.slane %v404, 6
      %v484 = vrot.slane %v406, 2
      %v485 = vrot.slane %v406, 4
      %v486 = vrot.slane %v406, 6
      %v487 = vrot.slane %v407, 2
      %v488 = vrot.slane %v407, 4
      %v489 = vrot.slane %v407, 6
      %v490 = vrot.slane %v409, 2
      %v491 = vrot.slane %v409, 4
      %v492 = vrot.slane %v409, 6
      %v493 = vrot.slane %v410, 2
      %v494 = vrot.slane %v410, 4
      %v495 = vrot.slane %v410, 6
      %v496 = vrot.slane %v412, 2
      %v497 = vrot.slane %v412, 4
      %v498 = vrot.slane %v412, 6
      %v499 = vrot.slane %v413, 2
      %v500 = vrot.slane %v413, 4
      %v501 = vrot.slane %v413, 6
      %v502 = vrot.slane %v415, 2
      %v503 = vrot.slane %v415, 4
      %v504 = vrot.slane %v415, 6
      %v505 = vrot.slane %v416, 2
      %v506 = vrot.slane %v416, 4
      %v507 = vrot.slane %v416, 6
      %v508 = vld [vmem:[%s1] sm:$0xf]
      %509 = vst [vmem:[#allocation1] ss:$4 sm:$0xff] %v388
      %s510 = scalar_lea.vmem [#allocation1], 1
      %511 = vst [vmem:[%s510] ss:$4 sm:$0xff] %v448
      %s512 = scalar_lea.vmem [#allocation1], 2
      %513 = vst [vmem:[%s512] ss:$4 sm:$0xff] %v449
      %s514 = scalar_lea.vmem [#allocation1], 3
      %515 = vst [vmem:[%s514] ss:$4 sm:$0xff] %v450
      %s516 = scalar_lea.vmem [#allocation1], 32
      %517 = vst [vmem:[%s516] ss:$4 sm:$0xff] %v389
      %s518 = scalar_lea.vmem [#allocation1], 33
      %519 = vst [vmem:[%s518] ss:$4 sm:$0xff] %v451
      %s520 = scalar_lea.vmem [#allocation1], 34
      %521 = vst [vmem:[%s520] ss:$4 sm:$0xff] %v452
      %s522 = scalar_lea.vmem [#allocation1], 35
      %523 = vst [vmem:[%s522] ss:$4 sm:$0xff] %v453
      %v524 = vld.sshfl [vmem:[#allocation1] sm:$0xff pattern:$0x73625140]
      %v525 = vld.sshfl [vmem:[#allocation1 + $0x20] sm:$0xff pattern:$0x73625140]
      %526 = vst [vmem:[#allocation1] ss:$4 sm:$0xff] %v390
      %527 = vst [vmem:[%s510] ss:$4 sm:$0xff] %v391
      %528 = vst [vmem:[%s512] ss:$4 sm:$0xff] %v454
      %529 = vst [vmem:[%s514] ss:$4 sm:$0xff] %v455
      %530 = vst [vmem:[%s516] ss:$4 sm:$0xff] %v456
      %531 = vst [vmem:[%s518] ss:$4 sm:$0xff] %v392
      %532 = vst [vmem:[%s520] ss:$4 sm:$0xff] %v457
      %533 = vst [vmem:[%s522] ss:$4 sm:$0xff] %v458
      %v534 = vld.sshfl [vmem:[#allocation1] sm:$0xff pattern:$0x73625140]
      %v535 = vld.sshfl [vmem:[#allocation1 + $0x20] sm:$0xff pattern:$0x73625140]
      %536 = vst [vmem:[#allocation1] ss:$4 sm:$0xff] %v459
      %537 = vst [vmem:[%s510] ss:$4 sm:$0xff] %v393
      %538 = vst [vmem:[%s512] ss:$4 sm:$0xff] %v394
      %539 = vst [vmem:[%s514] ss:$4 sm:$0xff] %v460
      %540 = vst [vmem:[%s516] ss:$4 sm:$0xff] %v461
      %541 = vst [vmem:[%s518] ss:$4 sm:$0xff] %v462
      %542 = vst [vmem:[%s520] ss:$4 sm:$0xff] %v395
      %543 = vst [vmem:[%s522] ss:$4 sm:$0xff] %v463
      %v544 = vld.sshfl [vmem:[#allocation1] sm:$0xff pattern:$0x73625140]
      %v545 = vld.sshfl [vmem:[#allocation1 + $0x20] sm:$0xff pattern:$0x73625140]
      %546 = vst [vmem:[#allocation1] ss:$4 sm:$0xff] %v464
      %547 = vst [vmem:[%s510] ss:$4 sm:$0xff] %v465
      %548 = vst [vmem:[%s512] ss:$4 sm:$0xff] %v396
      %549 = vst [vmem:[%s514] ss:$4 sm:$0xff] %v397
      %550 = vst [vmem:[%s516] ss:$4 sm:$0xff] %v466
      %551 = vst [vmem:[%s518] ss:$4 sm:$0xff] %v467
      %552 = vst [vmem:[%s520] ss:$4 sm:$0xff] %v468
      %553 = vst [vmem:[%s522] ss:$4 sm:$0xff] %v398
      %v554 = vld.sshfl [vmem:[#allocation1] sm:$0xff pattern:$0x73625140]
      %v555 = vld.sshfl [vmem:[#allocation1 + $0x20] sm:$0xff pattern:$0x73625140]
      %556 = vst [vmem:[#allocation1] ss:$4 sm:$0xff] %v469
      %557 = vst [vmem:[%s510] ss:$4 sm:$0xff] %v470
      %558 = vst [vmem:[%s512] ss:$4 sm:$0xff] %v471
      %559 = vst [vmem:[%s514] ss:$4 sm:$0xff] %v399
      %560 = vst [vmem:[%s516] ss:$4 sm:$0xff] %v400
      %561 = vst [vmem:[%s518] ss:$4 sm:$0xff] %v472
      %562 = vst [vmem:[%s520] ss:$4 sm:$0xff] %v473
      %563 = vst [vmem:[%s522] ss:$4 sm:$0xff] %v474
      %v564 = vld.sshfl [vmem:[#allocation1] sm:$0xff pattern:$0x73625140]
      %v565 = vld.sshfl [vmem:[#allocation1 + $0x20] sm:$0xff pattern:$0x73625140]
      %566 = vst [vmem:[#allocation1] ss:$4 sm:$0xff] %v401
      %567 = vst [vmem:[%s510] ss:$4 sm:$0xff] %v475
      %568 = vst [vmem:[%s512] ss:$4 sm:$0xff] %v476
      %569 = vst [vmem:[%s514] ss:$4 sm:$0xff] %v477
      %570 = vst [vmem:[%s516] ss:$4 sm:$0xff] %v402
      %571 = vst [vmem:[%s518] ss:$4 sm:$0xff] %v403
      %572 = vst [vmem:[%s520] ss:$4 sm:$0xff] %v478
      %573 = vst [vmem:[%s522] ss:$4 sm:$0xff] %v479
      %v574 = vld.sshfl [vmem:[#allocation1] sm:$0xff pattern:$0x73625140]
      %v575 = vld.sshfl [vmem:[#allocation1 + $0x20] sm:$0xff pattern:$0x73625140]
      %576 = vst [vmem:[#allocation1] ss:$4 sm:$0xff] %v480
      %577 = vst [vmem:[%s510] ss:$4 sm:$0xff] %v404
      %578 = vst [vmem:[%s512] ss:$4 sm:$0xff] %v481
      %579 = vst [vmem:[%s514] ss:$4 sm:$0xff] %v482
      %580 = vst [vmem:[%s516] ss:$4 sm:$0xff] %v483
      %581 = vst [vmem:[%s518] ss:$4 sm:$0xff] %v405
      %582 = vst [vmem:[%s520] ss:$4 sm:$0xff] %v406
      %583 = vst [vmem:[%s522] ss:$4 sm:$0xff] %v484
      %v584 = vld.sshfl [vmem:[#allocation1] sm:$0xff pattern:$0x73625140]
      %v585 = vld.sshfl [vmem:[#allocation1 + $0x20] sm:$0xff pattern:$0x73625140]
      %586 = vst [vmem:[#allocation1] ss:$4 sm:$0xff] %v485
      %587 = vst [vmem:[%s510] ss:$4 sm:$0xff] %v486
      %588 = vst [vmem:[%s512] ss:$4 sm:$0xff] %v407
      %589 = vst [vmem:[%s514] ss:$4 sm:$0xff] %v487
      %590 = vst [vmem:[%s516] ss:$4 sm:$0xff] %v488
      %591 = vst [vmem:[%s518] ss:$4 sm:$0xff] %v489
      %592 = vst [vmem:[%s520] ss:$4 sm:$0xff] %v408
      %593 = vst [vmem:[%s522] ss:$4 sm:$0xff] %v409
      %v594 = vld.sshfl [vmem:[#allocation1] sm:$0xff pattern:$0x73625140]
      %v595 = vld.sshfl [vmem:[#allocation1 + $0x20] sm:$0xff pattern:$0x73625140]
      %596 = vst [vmem:[#allocation1] ss:$4 sm:$0xff] %v490
      %597 = vst [vmem:[%s510] ss:$4 sm:$0xff] %v491
      %598 = vst [vmem:[%s512] ss:$4 sm:$0xff] %v492
      %599 = vst [vmem:[%s514] ss:$4 sm:$0xff] %v410
      %600 = vst [vmem:[%s516] ss:$4 sm:$0xff] %v493
      %601 = vst [vmem:[%s518] ss:$4 sm:$0xff] %v494
      %602 = vst [vmem:[%s520] ss:$4 sm:$0xff] %v495
      %603 = vst [vmem:[%s522] ss:$4 sm:$0xff] %v411
      %v604 = vld.sshfl [vmem:[#allocation1] sm:$0xff pattern:$0x73625140]
      %v605 = vld.sshfl [vmem:[#allocation1 + $0x20] sm:$0xff pattern:$0x73625140]
      %606 = vst [vmem:[#allocation1] ss:$4 sm:$0xff] %v412
      %607 = vst [vmem:[%s510] ss:$4 sm:$0xff] %v496
      %608 = vst [vmem:[%s512] ss:$4 sm:$0xff] %v497
      %609 = vst [vmem:[%s514] ss:$4 sm:$0xff] %v498
      %610 = vst [vmem:[%s516] ss:$4 sm:$0xff] %v413
      %611 = vst [vmem:[%s518] ss:$4 sm:$0xff] %v499
      %612 = vst [vmem:[%s520] ss:$4 sm:$0xff] %v500
      %613 = vst [vmem:[%s522] ss:$4 sm:$0xff] %v501
      %v614 = vld.sshfl [vmem:[#allocation1] sm:$0xff pattern:$0x73625140]
      %v615 = vld.sshfl [vmem:[#allocation1 + $0x20] sm:$0xff pattern:$0x73625140]
      %616 = vst [vmem:[#allocation1] ss:$4 sm:$0xff] %v414
      %617 = vst [vmem:[%s510] ss:$4 sm:$0xff] %v415
      %618 = vst [vmem:[%s512] ss:$4 sm:$0xff] %v502
      %619 = vst [vmem:[%s514] ss:$4 sm:$0xff] %v503
      %620 = vst [vmem:[%s516] ss:$4 sm:$0xff] %v504
      %621 = vst [vmem:[%s518] ss:$4 sm:$0xff] %v416
      %622 = vst [vmem:[%s520] ss:$4 sm:$0xff] %v505
      %623 = vst [vmem:[%s522] ss:$4 sm:$0xff] %v506
      %v624 = vld.sshfl [vmem:[#allocation1] sm:$0xff pattern:$0x73625140]
      %v625 = vld.sshfl [vmem:[#allocation1 + $0x20] sm:$0xff pattern:$0x73625140]
      %626 = vst [vmem:[#allocation1] ss:$4 sm:$0xff] %v507
      %627 = vst [vmem:[%s510] ss:$4 sm:$0xff] %v417
      %v628 = vld.sshfl [vmem:[#allocation1] sm:$0xff pattern:$0x73625140]
      %vm629 = vcmask 31744
      %v630 = vsel %vm629, %v524, 0
      %v632 = vsel %vm629, %v525, 0
      %v634 = vsel %vm629, %v534, 0
      %v636 = vsel %vm629, %v535, 0
      %v638 = vsel %vm629, %v544, 0
      %v640 = vsel %vm629, %v545, 0
      %v642 = vsel %vm629, %v554, 0
      %v644 = vsel %vm629, %v555, 0
      %v646 = vsel %vm629, %v564, 0
      %v648 = vsel %vm629, %v565, 0
      %v650 = vsel %vm629, %v574, 0
      %v652 = vsel %vm629, %v575, 0
      %v654 = vsel %vm629, %v584, 0
      %v656 = vsel %vm629, %v585, 0
      %v658 = vsel %vm629, %v594, 0
      %v660 = vsel %vm629, %v595, 0
      %v662 = vsel %vm629, %v604, 0
      %v664 = vsel %vm629, %v605, 0
      %v666 = vsel %vm629, %v614, 0
      %v668 = vsel %vm629, %v615, 0
      %v670 = vsel %vm629, %v624, 0
      %v672 = vsel %vm629, %v625, 0
      %v674 = vsel %vm629, %v628, 0
      %vm676 = vcmask 1043456
      %v678 = vsel %vm676, %v508, 0
      %680 = vmatpush.msra.mxu0 0.0
      %681 = vmatpush.msra.mxu0 0.0
      %682 = vmatpush.msra.mxu0 0.0
      %683 = vmatpush.msra.mxu0 0.0
      %684 = vmatpush.msra.mxu0 0.0
      %685 = vmatpush.msra.mxu0 0.0
      %686 = vmatpush.msra.mxu0 0.0
      %687 = vmatpush.msra.mxu0 0.0
      %688 = vmatpush.msra.mxu0 0.0
      %689 = vmatpush.msra.mxu0 0.0
      %690 = vmatpush.msra.mxu0 0.0
      %691 = vmatpush.msra.mxu0 0.0
      %692 = vmatpush.msra.mxu0 0.0
      %693 = vmatpush.msra.mxu0 0.0
      %694 = vmatpush.msra.mxu0 0.0
      %695 = vmatpush.msra.mxu0 %v678
      %696 = vmatmul.f32.gmra.mxu0 %v630
      %v697 = vpop.f32.mrf.mxu0
      %v698 = vadd.f32 0.0, %v697
      %699 = vmatmul.f32.gmra.mxu0 %v632
      %v700 = vpop.f32.mrf.mxu0
      %v701 = vadd.f32 0.0, %v700
      %702 = vmatmul.f32.gmra.mxu0 %v634
      %v703 = vpop.f32.mrf.mxu0
      %v704 = vadd.f32 0.0, %v703
      %705 = vmatmul.f32.gmra.mxu0 %v636
      %v706 = vpop.f32.mrf.mxu0
      %v707 = vadd.f32 0.0, %v706
      %708 = vmatmul.f32.gmra.mxu0 %v638
      %v709 = vpop.f32.mrf.mxu0
      %v710 = vadd.f32 0.0, %v709
      %711 = vmatmul.f32.gmra.mxu0 %v640
      %v712 = vpop.f32.mrf.mxu0
      %v713 = vadd.f32 0.0, %v712
      %714 = vmatmul.f32.gmra.mxu0 %v642
      %v715 = vpop.f32.mrf.mxu0
      %v716 = vadd.f32 0.0, %v715
      %717 = vmatmul.f32.gmra.mxu0 %v644
      %v718 = vpop.f32.mrf.mxu0
      %v719 = vadd.f32 0.0, %v718
      %720 = vmatmul.f32.gmra.mxu0 %v646
      %v721 = vpop.f32.mrf.mxu0
      %v722 = vadd.f32 0.0, %v721
      %723 = vmatmul.f32.gmra.mxu0 %v648
      %v724 = vpop.f32.mrf.mxu0
      %v725 = vadd.f32 0.0, %v724
      %726 = vmatmul.f32.gmra.mxu0 %v650
      %v727 = vpop.f32.mrf.mxu0
      %v728 = vadd.f32 0.0, %v727
      %729 = vmatmul.f32.gmra.mxu0 %v652
      %v730 = vpop.f32.mrf.mxu0
      %v731 = vadd.f32 0.0, %v730
      %732 = vmatmul.f32.gmra.mxu0 %v654
      %v733 = vpop.f32.mrf.mxu0
      %v734 = vadd.f32 0.0, %v733
      %735 = vmatmul.f32.gmra.mxu0 %v656
      %v736 = vpop.f32.mrf.mxu0
      %v737 = vadd.f32 0.0, %v736
      %738 = vmatmul.f32.gmra.mxu0 %v658
      %v739 = vpop.f32.mrf.mxu0
      %v740 = vadd.f32 0.0, %v739
      %741 = vmatmul.f32.gmra.mxu0 %v660
      %v742 = vpop.f32.mrf.mxu0
      %v743 = vadd.f32 0.0, %v742
      %744 = vmatmul.f32.gmra.mxu0 %v662
      %v745 = vpop.f32.mrf.mxu0
      %v746 = vadd.f32 0.0, %v745
      %747 = vmatmul.f32.gmra.mxu0 %v664
      %v748 = vpop.f32.mrf.mxu0
      %v749 = vadd.f32 0.0, %v748
      %750 = vmatmul.f32.gmra.mxu0 %v666
      %v751 = vpop.f32.mrf.mxu0
      %v752 = vadd.f32 0.0, %v751
      %753 = vmatmul.f32.gmra.mxu0 %v668
      %v754 = vpop.f32.mrf.mxu0
      %v755 = vadd.f32 0.0, %v754
      %756 = vmatmul.f32.gmra.mxu0 %v670
      %v757 = vpop.f32.mrf.mxu0
      %v758 = vadd.f32 0.0, %v757
      %759 = vmatmul.f32.gmra.mxu0 %v672
      %v760 = vpop.f32.mrf.mxu0
      %v761 = vadd.f32 0.0, %v760
      %762 = vmatmul.f32.gmra.mxu0 %v674
      %v763 = vpop.f32.mrf.mxu0
      %v764 = vadd.f32 0.0, %v763
      %765 = vdwg.mxu0
      %v766 = vld [vmem:[%s2] sm:$0x1]
      %v768 = vperm.slane %v766, 0
      %v770 = vmul.f32 %v698, %v768
      %v771 = vmul.f32 %v701, %v768
      %v772 = vmul.f32 %v704, %v768
      %v773 = vmul.f32 %v707, %v768
      %v774 = vmul.f32 %v710, %v768
      %v775 = vmul.f32 %v713, %v768
      %v776 = vmul.f32 %v716, %v768
      %v777 = vmul.f32 %v719, %v768
      %v778 = vmul.f32 %v722, %v768
      %v779 = vmul.f32 %v725, %v768
      %v780 = vmul.f32 %v728, %v768
      %v781 = vmul.f32 %v731, %v768
      %v782 = vmul.f32 %v734, %v768
      %v783 = vmul.f32 %v737, %v768
      %v784 = vmul.f32 %v740, %v768
      %v785 = vmul.f32 %v743, %v768
      %v786 = vmul.f32 %v746, %v768
      %v787 = vmul.f32 %v749, %v768
      %v788 = vmul.f32 %v752, %v768
      %v789 = vmul.f32 %v755, %v768
      %v790 = vmul.f32 %v758, %v768
      %v791 = vmul.f32 %v761, %v768
      %v792 = vmul.f32 %v764, %v768
      %v793 = vld [vmem:[%s3] sm:$0x1]
      %v795 = vperm.slane %v793, 0
      %v797 = vadd.f32 %v770, %v795
      %v798 = vadd.f32 %v771, %v795
      %v799 = vadd.f32 %v772, %v795
      %v800 = vadd.f32 %v773, %v795
      %v801 = vadd.f32 %v774, %v795
      %v802 = vadd.f32 %v775, %v795
      %v803 = vadd.f32 %v776, %v795
      %v804 = vadd.f32 %v777, %v795
      %v805 = vadd.f32 %v778, %v795
      %v806 = vadd.f32 %v779, %v795
      %v807 = vadd.f32 %v780, %v795
      %v808 = vadd.f32 %v781, %v795
      %v809 = vadd.f32 %v782, %v795
      %v810 = vadd.f32 %v783, %v795
      %v811 = vadd.f32 %v784, %v795
      %v812 = vadd.f32 %v785, %v795
      %v813 = vadd.f32 %v786, %v795
      %v814 = vadd.f32 %v787, %v795
      %v815 = vadd.f32 %v788, %v795
      %v816 = vadd.f32 %v789, %v795
      %v817 = vadd.f32 %v790, %v795
      %v818 = vadd.f32 %v791, %v795
      %v819 = vadd.f32 %v792, %v795
      %v820 = vmax.f32 %v797, 0.0
      %v821 = vmax.f32 %v798, 0.0
      %v822 = vmax.f32 %v799, 0.0
      %v823 = vmax.f32 %v800, 0.0
      %v824 = vmax.f32 %v801, 0.0
      %v825 = vmax.f32 %v802, 0.0
      %v826 = vmax.f32 %v803, 0.0
      %v827 = vmax.f32 %v804, 0.0
      %v828 = vmax.f32 %v805, 0.0
      %v829 = vmax.f32 %v806, 0.0
      %v830 = vmax.f32 %v807, 0.0
      %v831 = vmax.f32 %v808, 0.0
      %v832 = vmax.f32 %v809, 0.0
      %v833 = vmax.f32 %v810, 0.0
      %v834 = vmax.f32 %v811, 0.0
      %v835 = vmax.f32 %v812, 0.0
      %v836 = vmax.f32 %v813, 0.0
      %v837 = vmax.f32 %v814, 0.0
      %v838 = vmax.f32 %v815, 0.0
      %v839 = vmax.f32 %v816, 0.0
      %v840 = vmax.f32 %v817, 0.0
      %v841 = vmax.f32 %v818, 0.0
      %v842 = vmax.f32 %v819, 0.0
      %v843 = vmin.f32 %v820, 6.0
      %v844 = vmin.f32 %v821, 6.0
      %v845 = vmin.f32 %v822, 6.0
      %v846 = vmin.f32 %v823, 6.0
      %v847 = vmin.f32 %v824, 6.0
      %v848 = vmin.f32 %v825, 6.0
      %v849 = vmin.f32 %v826, 6.0
      %v850 = vmin.f32 %v827, 6.0
      %v851 = vmin.f32 %v828, 6.0
      %v852 = vmin.f32 %v829, 6.0
      %v853 = vmin.f32 %v830, 6.0
      %v854 = vmin.f32 %v831, 6.0
      %v855 = vmin.f32 %v832, 6.0
      %v856 = vmin.f32 %v833, 6.0
      %v857 = vmin.f32 %v834, 6.0
      %v858 = vmin.f32 %v835, 6.0
      %v859 = vmin.f32 %v836, 6.0
      %v860 = vmin.f32 %v837, 6.0
      %v861 = vmin.f32 %v838, 6.0
      %v862 = vmin.f32 %v839, 6.0
      %v863 = vmin.f32 %v840, 6.0
      %v864 = vmin.f32 %v841, 6.0
      %v865 = vmin.f32 %v842, 6.0
      %v889 = vrot.slane %v843, 2
      %v890 = vrot.slane %v843, 4
      %v891 = vrot.slane %v843, 6
      %v892 = vrot.slane %v844, 2
      %v893 = vrot.slane %v844, 4
      %v894 = vrot.slane %v844, 6
      %v895 = vrot.slane %v845, 2
      %v896 = vrot.slane %v845, 4
      %v897 = vrot.slane %v845, 6
      %v898 = vrot.slane %v846, 2
      %v899 = vrot.slane %v846, 4
      %v900 = vrot.slane %v846, 6
      %v901 = vrot.slane %v847, 2
      %v902 = vrot.slane %v847, 4
      %v903 = vrot.slane %v847, 6
      %v904 = vrot.slane %v848, 2
      %v905 = vrot.slane %v848, 4
      %v906 = vrot.slane %v848, 6
      %v907 = vrot.slane %v849, 2
      %v908 = vrot.slane %v849, 4
      %v909 = vrot.slane %v849, 6
      %v910 = vrot.slane %v850, 2
      %v911 = vrot.slane %v850, 4
      %v912 = vrot.slane %v850, 6
      %v913 = vrot.slane %v851, 2
      %v914 = vrot.slane %v851, 4
      %v915 = vrot.slane %v851, 6
      %v916 = vrot.slane %v852, 2
      %v917 = vrot.slane %v852, 4
      %v918 = vrot.slane %v852, 6
      %v919 = vrot.slane %v853, 2
      %v920 = vrot.slane %v853, 4
      %v921 = vrot.slane %v853, 6
      %v922 = vrot.slane %v854, 2
      %v923 = vrot.slane %v854, 4
      %v924 = vrot.slane %v854, 6
      %v925 = vrot.slane %v855, 2
      %v926 = vrot.slane %v855, 4
      %v927 = vrot.slane %v855, 6
      %v928 = vrot.slane %v856, 2
      %v929 = vrot.slane %v856, 4
      %v930 = vrot.slane %v856, 6
      %v931 = vrot.slane %v857, 2
      %v932 = vrot.slane %v857, 4
      %v933 = vrot.slane %v857, 6
      %v934 = vrot.slane %v858, 2
      %v935 = vrot.slane %v858, 4
      %v936 = vrot.slane %v858, 6
      %v937 = vrot.slane %v859, 2
      %v938 = vrot.slane %v859, 4
      %v939 = vrot.slane %v859, 6
      %v940 = vrot.slane %v860, 2
      %v941 = vrot.slane %v860, 4
      %v942 = vrot.slane %v860, 6
      %v943 = vrot.slane %v861, 2
      %v944 = vrot.slane %v861, 4
      %v945 = vrot.slane %v861, 6
      %v946 = vrot.slane %v862, 2
      %v947 = vrot.slane %v862, 4
      %v948 = vrot.slane %v862, 6
      %v949 = vrot.slane %v863, 2
      %v950 = vrot.slane %v863, 4
      %v951 = vrot.slane %v863, 6
      %v952 = vrot.slane %v864, 2
      %v953 = vrot.slane %v864, 4
      %v954 = vrot.slane %v864, 6
      %v955 = vrot.slane %v865, 2
      %v956 = vstv %s385
      %v957 = vadd.s32 %v956, 1
      %v958 = vadd.s32 %v956, 2
      %v959 = vadd.s32 %v956, 3
      %v960 = vadd.s32 %v956, 4
      %v961 = vadd.s32 %v956, 5
      %v962 = vadd.s32 %v956, 6
      %v963 = vadd.s32 %v956, 7
      %v964 = vadd.s32 %v956, 8
      %v965 = vadd.s32 %v956, 9
      %v966 = vlaneseq
      %v967 = vshrl.u32 %v966, 7
      %v968 = vadd.s32 %v967, 8
      %v969 = vadd.s32 %v967, 16
      %vm970 = vcmp.ge.s32.totalorder %v956, 1
      %vm971 = vcmp.ge.s32.totalorder %v957, 1
      %vm972 = vcmp.ge.s32.totalorder %v958, 1
      %vm973 = vcmp.ge.s32.totalorder %v959, 1
      %vm974 = vcmp.ge.s32.totalorder %v960, 1
      %vm975 = vcmp.ge.s32.totalorder %v961, 1
      %vm976 = vcmp.ge.s32.totalorder %v962, 1
      %vm977 = vcmp.ge.s32.totalorder %v963, 1
      %vm978 = vcmp.ge.s32.totalorder %v964, 1
      %vm979 = vcmp.ge.s32.totalorder %v965, 1
      %vm980 = vcmp.le.s32.totalorder %v956, 16
      %vm981 = vcmp.le.s32.totalorder %v957, 16
      %vm982 = vcmp.le.s32.totalorder %v958, 16
      %vm983 = vcmp.le.s32.totalorder %v959, 16
      %vm984 = vcmp.le.s32.totalorder %v960, 16
      %vm985 = vcmp.le.s32.totalorder %v961, 16
      %vm986 = vcmp.le.s32.totalorder %v962, 16
      %vm987 = vcmp.le.s32.totalorder %v963, 16
      %vm988 = vcmp.le.s32.totalorder %v964, 16
      %vm989 = vcmp.le.s32.totalorder %v965, 16
      %vm990 = vmand %vm970, %vm980
      %vm991 = vmand %vm971, %vm981
      %vm992 = vmand %vm972, %vm982
      %vm993 = vmand %vm973, %vm983
      %vm994 = vmand %vm974, %vm984
      %vm995 = vmand %vm975, %vm985
      %vm996 = vmand %vm976, %vm986
      %vm997 = vmand %vm977, %vm987
      %vm998 = vmand %vm978, %vm988
      %vm999 = vmand %vm979, %vm989
      %vm1000 = vcmp.ge.s32.totalorder %v967, 1
      %vm1001 = vcmp.ge.s32.totalorder %v968, 1
      %vm1002 = vcmp.ge.s32.totalorder %v969, 1
      %vm1003 = vmand %vm990, %vm1000
      %vm1004 = vmand %vm990, %vm1001
      %vm1005 = vmand %vm990, %vm1002
      %vm1006 = vmand %vm991, %vm1000
      %vm1007 = vmand %vm991, %vm1001
      %vm1008 = vmand %vm991, %vm1002
      %vm1009 = vmand %vm992, %vm1000
      %vm1010 = vmand %vm992, %vm1001
      %vm1011 = vmand %vm992, %vm1002
      %vm1012 = vmand %vm993, %vm1000
      %vm1013 = vmand %vm993, %vm1001
      %vm1014 = vmand %vm993, %vm1002
      %vm1015 = vmand %vm994, %vm1000
      %vm1016 = vmand %vm994, %vm1001
      %vm1017 = vmand %vm994, %vm1002
      %vm1018 = vmand %vm995, %vm1000
      %vm1019 = vmand %vm995, %vm1001
      %vm1020 = vmand %vm995, %vm1002
      %vm1021 = vmand %vm996, %vm1000
      %vm1022 = vmand %vm996, %vm1001
      %vm1023 = vmand %vm996, %vm1002
      %vm1024 = vmand %vm997, %vm1000
      %vm1025 = vmand %vm997, %vm1001
      %vm1026 = vmand %vm997, %vm1002
      %vm1027 = vmand %vm998, %vm1000
      %vm1028 = vmand %vm998, %vm1001
      %vm1029 = vmand %vm998, %vm1002
      %vm1030 = vmand %vm999, %vm1000
      %vm1031 = vmand %vm999, %vm1001
      %vm1032 = vmand %vm999, %vm1002
      %vm1033 = vcmp.le.s32.totalorder %v967, 16
      %vm1034 = vcmp.le.s32.totalorder %v968, 16
      %vm1035 = vcmp.le.s32.totalorder %v969, 16
      %vm1036 = vmand %vm1003, %vm1033
      %vm1037 = vmand %vm1004, %vm1034
      %vm1038 = vmand %vm1005, %vm1035
      %vm1039 = vmand %vm1006, %vm1033
      %vm1040 = vmand %vm1007, %vm1034
      %vm1041 = vmand %vm1008, %vm1035
      %vm1042 = vmand %vm1009, %vm1033
      %vm1043 = vmand %vm1010, %vm1034
      %vm1044 = vmand %vm1011, %vm1035
      %vm1045 = vmand %vm1012, %vm1033
      %vm1046 = vmand %vm1013, %vm1034
      %vm1047 = vmand %vm1014, %vm1035
      %vm1048 = vmand %vm1015, %vm1033
      %vm1049 = vmand %vm1016, %vm1034
      %vm1050 = vmand %vm1017, %vm1035
      %vm1051 = vmand %vm1018, %vm1033
      %vm1052 = vmand %vm1019, %vm1034
      %vm1053 = vmand %vm1020, %vm1035
      %vm1054 = vmand %vm1021, %vm1033
      %vm1055 = vmand %vm1022, %vm1034
      %vm1056 = vmand %vm1023, %vm1035
      %vm1057 = vmand %vm1024, %vm1033
      %vm1058 = vmand %vm1025, %vm1034
      %vm1059 = vmand %vm1026, %vm1035
      %vm1060 = vmand %vm1027, %vm1033
      %vm1061 = vmand %vm1028, %vm1034
      %vm1062 = vmand %vm1029, %vm1035
      %vm1063 = vmand %vm1030, %vm1033
      %vm1064 = vmand %vm1031, %vm1034
      %vm1065 = vmand %vm1032, %vm1035
      %v1066 = vsel %vm1036, 1, 0
      %v1067 = vsel %vm1037, 1, 0
      %v1068 = vsel %vm1038, 1, 0
      %v1069 = vsel %vm1039, 1, 0
      %v1070 = vsel %vm1040, 1, 0
      %v1071 = vsel %vm1041, 1, 0
      %v1072 = vsel %vm1042, 1, 0
      %v1073 = vsel %vm1043, 1, 0
      %v1074 = vsel %vm1044, 1, 0
      %v1075 = vsel %vm1045, 1, 0
      %v1076 = vsel %vm1046, 1, 0
      %v1077 = vsel %vm1047, 1, 0
      %v1078 = vsel %vm1048, 1, 0
      %v1079 = vsel %vm1049, 1, 0
      %v1080 = vsel %vm1050, 1, 0
      %v1081 = vsel %vm1051, 1, 0
      %v1082 = vsel %vm1052, 1, 0
      %v1083 = vsel %vm1053, 1, 0
      %v1084 = vsel %vm1054, 1, 0
      %v1085 = vsel %vm1055, 1, 0
      %v1086 = vsel %vm1056, 1, 0
      %v1087 = vsel %vm1057, 1, 0
      %v1088 = vsel %vm1058, 1, 0
      %v1089 = vsel %vm1059, 1, 0
      %v1090 = vsel %vm1060, 1, 0
      %v1091 = vsel %vm1061, 1, 0
      %v1092 = vsel %vm1062, 1, 0
      %v1093 = vsel %vm1063, 1, 0
      %v1094 = vsel %vm1064, 1, 0
      %v1095 = vsel %vm1065, 1, 0
      %vm1096 = vcmp.eq.s32.totalorder %v1066, 1
      %vm1097 = vcmp.eq.s32.totalorder %v1067, 1
      %vm1098 = vcmp.eq.s32.totalorder %v1068, 1
      %vm1099 = vcmp.eq.s32.totalorder %v1069, 1
      %vm1100 = vcmp.eq.s32.totalorder %v1070, 1
      %vm1101 = vcmp.eq.s32.totalorder %v1071, 1
      %vm1102 = vcmp.eq.s32.totalorder %v1072, 1
      %vm1103 = vcmp.eq.s32.totalorder %v1073, 1
      %vm1104 = vcmp.eq.s32.totalorder %v1074, 1
      %vm1105 = vcmp.eq.s32.totalorder %v1075, 1
      %vm1106 = vcmp.eq.s32.totalorder %v1076, 1
      %vm1107 = vcmp.eq.s32.totalorder %v1077, 1
      %vm1108 = vcmp.eq.s32.totalorder %v1078, 1
      %vm1109 = vcmp.eq.s32.totalorder %v1079, 1
      %vm1110 = vcmp.eq.s32.totalorder %v1080, 1
      %vm1111 = vcmp.eq.s32.totalorder %v1081, 1
      %vm1112 = vcmp.eq.s32.totalorder %v1082, 1
      %vm1113 = vcmp.eq.s32.totalorder %v1083, 1
      %vm1114 = vcmp.eq.s32.totalorder %v1084, 1
      %vm1115 = vcmp.eq.s32.totalorder %v1085, 1
      %vm1116 = vcmp.eq.s32.totalorder %v1086, 1
      %vm1117 = vcmp.eq.s32.totalorder %v1087, 1
      %vm1118 = vcmp.eq.s32.totalorder %v1088, 1
      %vm1119 = vcmp.eq.s32.totalorder %v1089, 1
      %vm1120 = vcmp.eq.s32.totalorder %v1090, 1
      %vm1121 = vcmp.eq.s32.totalorder %v1091, 1
      %vm1122 = vcmp.eq.s32.totalorder %v1092, 1
      %vm1123 = vcmp.eq.s32.totalorder %v1093, 1
      %vm1124 = vcmp.eq.s32.totalorder %v1094, 1
      %vm1125 = vcmp.eq.s32.totalorder %v1095, 1
      %1126 = vst [vmem:[#allocation1] ss:$4 sm:$0xff] %v843
      %s1127 = scalar_lea.vmem [#allocation1], 1
      %1128 = vst [vmem:[%s1127] ss:$4 sm:$0xff] %v889
      %s1129 = scalar_lea.vmem [#allocation1], 2
      %1130 = vst [vmem:[%s1129] ss:$4 sm:$0xff] %v890
      %s1131 = scalar_lea.vmem [#allocation1], 3
      %1132 = vst [vmem:[%s1131] ss:$4 sm:$0xff] %v891
      %s1133 = scalar_lea.vmem [#allocation1], 32
      %1134 = vst [vmem:[%s1133] ss:$4 sm:$0xff] %v844
      %s1135 = scalar_lea.vmem [#allocation1], 33
      %1136 = vst [vmem:[%s1135] ss:$4 sm:$0xff] %v892
      %s1137 = scalar_lea.vmem [#allocation1], 34
      %1138 = vst [vmem:[%s1137] ss:$4 sm:$0xff] %v893
      %s1139 = scalar_lea.vmem [#allocation1], 35
      %1140 = vst [vmem:[%s1139] ss:$4 sm:$0xff] %v894
      %v1141 = vld.sshfl [vmem:[#allocation1] sm:$0xff pattern:$0x73625140]
      %v1142 = vld.sshfl [vmem:[#allocation1 + $0x20] sm:$0xff pattern:$0x73625140]
      %1143 = vst [vmem:[#allocation1] ss:$4 sm:$0xff] %v845
      %v1144 = vld.sshfl [vmem:[#allocation1] sm:$0xff pattern:$0x73625140]
      %1145 = vst [vmem:[%s1133] ss:$4 sm:$0xff] %v895
      %1146 = vst [vmem:[%s1135] ss:$4 sm:$0xff] %v896
      %1147 = vst [vmem:[%s1137] ss:$4 sm:$0xff] %v897
      %1148 = vst [vmem:[%s1139] ss:$4 sm:$0xff] %v846
      %v1149 = vld.sshfl [vmem:[#allocation1 + $0x20] sm:$0xff pattern:$0x73625140]
      %1150 = vst [vmem:[#allocation1] ss:$4 sm:$0xff] %v898
      %1151 = vst [vmem:[%s1127] ss:$4 sm:$0xff] %v899
      %1152 = vst [vmem:[%s1129] ss:$4 sm:$0xff] %v900
      %1153 = vst [vmem:[%s1131] ss:$4 sm:$0xff] %v847
      %1154 = vst [vmem:[%s1133] ss:$4 sm:$0xff] %v901
      %v1155 = vld.sshfl [vmem:[#allocation1] sm:$0xff pattern:$0x73625140]
      %v1156 = vld.sshfl [vmem:[#allocation1 + $0x20] sm:$0xff pattern:$0x73625140]
      %1157 = vst [vmem:[#allocation1] ss:$4 sm:$0xff] %v902
      %1158 = vst [vmem:[%s1127] ss:$4 sm:$0xff] %v903
      %1159 = vst [vmem:[%s1129] ss:$4 sm:$0xff] %v848
      %1160 = vst [vmem:[%s1131] ss:$4 sm:$0xff] %v904
      %1161 = vst [vmem:[%s1133] ss:$4 sm:$0xff] %v905
      %1162 = vst [vmem:[%s1135] ss:$4 sm:$0xff] %v906
      %1163 = vst [vmem:[%s1137] ss:$4 sm:$0xff] %v849
      %1164 = vst [vmem:[%s1139] ss:$4 sm:$0xff] %v907
      %v1165 = vld.sshfl [vmem:[#allocation1] sm:$0xff pattern:$0x73625140]
      %v1166 = vld.sshfl [vmem:[#allocation1 + $0x20] sm:$0xff pattern:$0x73625140]
      %1167 = vst [vmem:[#allocation1] ss:$4 sm:$0xff] %v908
      %v1168 = vld.sshfl [vmem:[#allocation1] sm:$0xff pattern:$0x73625140]
      %1169 = vst [vmem:[%s1133] ss:$4 sm:$0xff] %v909
      %1170 = vst [vmem:[%s1135] ss:$4 sm:$0xff] %v850
      %1171 = vst [vmem:[%s1137] ss:$4 sm:$0xff] %v910
      %1172 = vst [vmem:[%s1139] ss:$4 sm:$0xff] %v911
      %v1173 = vld.sshfl [vmem:[#allocation1 + $0x20] sm:$0xff pattern:$0x73625140]
      %1174 = vst [vmem:[#allocation1] ss:$4 sm:$0xff] %v912
      %1175 = vst [vmem:[%s1127] ss:$4 sm:$0xff] %v851
      %1176 = vst [vmem:[%s1129] ss:$4 sm:$0xff] %v913
      %1177 = vst [vmem:[%s1131] ss:$4 sm:$0xff] %v914
      %1178 = vst [vmem:[%s1133] ss:$4 sm:$0xff] %v915
      %v1179 = vld.sshfl [vmem:[#allocation1] sm:$0xff pattern:$0x73625140]
      %v1180 = vld.sshfl [vmem:[#allocation1 + $0x20] sm:$0xff pattern:$0x73625140]
      %1181 = vst [vmem:[#allocation1] ss:$4 sm:$0xff] %v852
      %1182 = vst [vmem:[%s1127] ss:$4 sm:$0xff] %v916
      %1183 = vst [vmem:[%s1129] ss:$4 sm:$0xff] %v917
      %1184 = vst [vmem:[%s1131] ss:$4 sm:$0xff] %v918
      %1185 = vst [vmem:[%s1133] ss:$4 sm:$0xff] %v853
      %1186 = vst [vmem:[%s1135] ss:$4 sm:$0xff] %v919
      %1187 = vst [vmem:[%s1137] ss:$4 sm:$0xff] %v920
      %1188 = vst [vmem:[%s1139] ss:$4 sm:$0xff] %v921
      %v1189 = vld.sshfl [vmem:[#allocation1] sm:$0xff pattern:$0x73625140]
      %v1190 = vld.sshfl [vmem:[#allocation1 + $0x20] sm:$0xff pattern:$0x73625140]
      %1191 = vst [vmem:[#allocation1] ss:$4 sm:$0xff] %v854
      %v1192 = vld.sshfl [vmem:[#allocation1] sm:$0xff pattern:$0x73625140]
      %1193 = vst [vmem:[%s1133] ss:$4 sm:$0xff] %v922
      %1194 = vst [vmem:[%s1135] ss:$4 sm:$0xff] %v923
      %1195 = vst [vmem:[%s1137] ss:$4 sm:$0xff] %v924
      %1196 = vst [vmem:[%s1139] ss:$4 sm:$0xff] %v855
      %v1197 = vld.sshfl [vmem:[#allocation1 + $0x20] sm:$0xff pattern:$0x73625140]
      %1198 = vst [vmem:[#allocation1] ss:$4 sm:$0xff] %v925
      %1199 = vst [vmem:[%s1127] ss:$4 sm:$0xff] %v926
      %1200 = vst [vmem:[%s1129] ss:$4 sm:$0xff] %v927
      %1201 = vst [vmem:[%s1131] ss:$4 sm:$0xff] %v856
      %1202 = vst [vmem:[%s1133] ss:$4 sm:$0xff] %v928
      %v1203 = vld.sshfl [vmem:[#allocation1] sm:$0xff pattern:$0x73625140]
      %v1204 = vld.sshfl [vmem:[#allocation1 + $0x20] sm:$0xff pattern:$0x73625140]
      %1205 = vst [vmem:[#allocation1] ss:$4 sm:$0xff] %v929
      %1206 = vst [vmem:[%s1127] ss:$4 sm:$0xff] %v930
      %1207 = vst [vmem:[%s1129] ss:$4 sm:$0xff] %v857
      %1208 = vst [vmem:[%s1131] ss:$4 sm:$0xff] %v931
      %1209 = vst [vmem:[%s1133] ss:$4 sm:$0xff] %v932
      %1210 = vst [vmem:[%s1135] ss:$4 sm:$0xff] %v933
      %1211 = vst [vmem:[%s1137] ss:$4 sm:$0xff] %v858
      %1212 = vst [vmem:[%s1139] ss:$4 sm:$0xff] %v934
      %v1213 = vld.sshfl [vmem:[#allocation1] sm:$0xff pattern:$0x73625140]
      %v1214 = vld.sshfl [vmem:[#allocation1 + $0x20] sm:$0xff pattern:$0x73625140]
      %1215 = vst [vmem:[#allocation1] ss:$4 sm:$0xff] %v935
      %v1216 = vld.sshfl [vmem:[#allocation1] sm:$0xff pattern:$0x73625140]
      %1217 = vst [vmem:[%s1133] ss:$4 sm:$0xff] %v936
      %1218 = vst [vmem:[%s1135] ss:$4 sm:$0xff] %v859
      %1219 = vst [vmem:[%s1137] ss:$4 sm:$0xff] %v937
      %1220 = vst [vmem:[%s1139] ss:$4 sm:$0xff] %v938
      %v1221 = vld.sshfl [vmem:[#allocation1 + $0x20] sm:$0xff pattern:$0x73625140]
      %1222 = vst [vmem:[#allocation1] ss:$4 sm:$0xff] %v939
      %1223 = vst [vmem:[%s1127] ss:$4 sm:$0xff] %v860
      %1224 = vst [vmem:[%s1129] ss:$4 sm:$0xff] %v940
      %1225 = vst [vmem:[%s1131] ss:$4 sm:$0xff] %v941
      %1226 = vst [vmem:[%s1133] ss:$4 sm:$0xff] %v942
      %v1227 = vld.sshfl [vmem:[#allocation1] sm:$0xff pattern:$0x73625140]
      %v1228 = vld.sshfl [vmem:[#allocation1 + $0x20] sm:$0xff pattern:$0x73625140]
      %1229 = vst [vmem:[#allocation1] ss:$4 sm:$0xff] %v861
      %1230 = vst [vmem:[%s1127] ss:$4 sm:$0xff] %v943
      %1231 = vst [vmem:[%s1129] ss:$4 sm:$0xff] %v944
      %1232 = vst [vmem:[%s1131] ss:$4 sm:$0xff] %v945
      %1233 = vst [vmem:[%s1133] ss:$4 sm:$0xff] %v862
      %1234 = vst [vmem:[%s1135] ss:$4 sm:$0xff] %v946
      %1235 = vst [vmem:[%s1137] ss:$4 sm:$0xff] %v947
      %1236 = vst [vmem:[%s1139] ss:$4 sm:$0xff] %v948
      %v1237 = vld.sshfl [vmem:[#allocation1] sm:$0xff pattern:$0x73625140]
      %v1238 = vld.sshfl [vmem:[#allocation1 + $0x20] sm:$0xff pattern:$0x73625140]
      %1239 = vst [vmem:[#allocation1] ss:$4 sm:$0xff] %v863
      %v1240 = vld.sshfl [vmem:[#allocation1] sm:$0xff pattern:$0x73625140]
      %1241 = vst [vmem:[%s1133] ss:$4 sm:$0xff] %v949
      %1242 = vst [vmem:[%s1135] ss:$4 sm:$0xff] %v950
      %1243 = vst [vmem:[%s1137] ss:$4 sm:$0xff] %v951
      %1244 = vst [vmem:[%s1139] ss:$4 sm:$0xff] %v864
      %v1245 = vld.sshfl [vmem:[#allocation1 + $0x20] sm:$0xff pattern:$0x73625140]
      %1246 = vst [vmem:[#allocation1] ss:$4 sm:$0xff] %v952
      %1247 = vst [vmem:[%s1127] ss:$4 sm:$0xff] %v953
      %1248 = vst [vmem:[%s1129] ss:$4 sm:$0xff] %v954
      %1249 = vst [vmem:[%s1131] ss:$4 sm:$0xff] %v865
      %1250 = vst [vmem:[%s1133] ss:$4 sm:$0xff] %v955
      %v1251 = vld.sshfl [vmem:[#allocation1] sm:$0xff pattern:$0x73625140]
      %v1252 = vld.sshfl [vmem:[#allocation1 + $0x20] sm:$0xff pattern:$0x73625140]
      %v1283 = vsel %vm1096, %v1141, 0.0
      %v1284 = vsel %vm1097, %v1142, 0.0
      %v1285 = vsel %vm1098, %v1144, 0.0
      %v1286 = vsel %vm1099, %v1149, 0.0
      %v1287 = vsel %vm1100, %v1155, 0.0
      %v1288 = vsel %vm1101, %v1156, 0.0
      %v1289 = vsel %vm1102, %v1165, 0.0
      %v1290 = vsel %vm1103, %v1166, 0.0
      %v1291 = vsel %vm1104, %v1168, 0.0
      %v1292 = vsel %vm1105, %v1173, 0.0
      %v1293 = vsel %vm1106, %v1179, 0.0
      %v1294 = vsel %vm1107, %v1180, 0.0
      %v1295 = vsel %vm1108, %v1189, 0.0
      %v1296 = vsel %vm1109, %v1190, 0.0
      %v1297 = vsel %vm1110, %v1192, 0.0
      %v1298 = vsel %vm1111, %v1197, 0.0
      %v1299 = vsel %vm1112, %v1203, 0.0
      %v1300 = vsel %vm1113, %v1204, 0.0
      %v1301 = vsel %vm1114, %v1213, 0.0
      %v1302 = vsel %vm1115, %v1214, 0.0
      %v1303 = vsel %vm1116, %v1216, 0.0
      %v1304 = vsel %vm1117, %v1221, 0.0
      %v1305 = vsel %vm1118, %v1227, 0.0
      %v1306 = vsel %vm1119, %v1228, 0.0
      %v1307 = vsel %vm1120, %v1237, 0.0
      %v1308 = vsel %vm1121, %v1238, 0.0
      %v1309 = vsel %vm1122, %v1240, 0.0
      %v1310 = vsel %vm1123, %v1245, 0.0
      %v1311 = vsel %vm1124, %v1251, 0.0
      %v1312 = vsel %vm1125, %v1252, 0.0
      %v1313 = vld [vmem:[%s4] sm:$0x7]
      %v1314 = vld [vmem:[%s4 + $0x4] sm:$0x7]
      %v1315 = vld [vmem:[%s4 + $0x8] sm:$0x7]
      %v1316 = vperm.slane %v1313, 0
      %v1317 = vmul.f32 %v1283, %v1316
      %v1318 = vmul.f32 %v1284, %v1316
      %v1319 = vmul.f32 %v1286, %v1316
      %v1320 = vmul.f32 %v1287, %v1316
      %v1321 = vmul.f32 %v1289, %v1316
      %v1322 = vmul.f32 %v1290, %v1316
      %v1323 = vmul.f32 %v1292, %v1316
      %v1324 = vmul.f32 %v1293, %v1316
      %v1325 = vmul.f32 %v1295, %v1316
      %v1326 = vmul.f32 %v1296, %v1316
      %v1327 = vmul.f32 %v1298, %v1316
      %v1328 = vmul.f32 %v1299, %v1316
      %v1329 = vmul.f32 %v1301, %v1316
      %v1330 = vmul.f32 %v1302, %v1316
      %v1331 = vmul.f32 %v1304, %v1316
      %v1332 = vmul.f32 %v1305, %v1316
      %v1333 = vadd.f32 %v1317, 0.0
      %v1334 = vadd.f32 %v1318, 0.0
      %v1335 = vadd.f32 %v1319, 0.0
      %v1336 = vadd.f32 %v1320, 0.0
      %v1337 = vadd.f32 %v1321, 0.0
      %v1338 = vadd.f32 %v1322, 0.0
      %v1339 = vadd.f32 %v1323, 0.0
      %v1340 = vadd.f32 %v1324, 0.0
      %v1341 = vadd.f32 %v1325, 0.0
      %v1342 = vadd.f32 %v1326, 0.0
      %v1343 = vadd.f32 %v1327, 0.0
      %v1344 = vadd.f32 %v1328, 0.0
      %v1345 = vadd.f32 %v1329, 0.0
      %v1346 = vadd.f32 %v1330, 0.0
      %v1347 = vadd.f32 %v1331, 0.0
      %v1348 = vadd.f32 %v1332, 0.0
      %v1349 = vperm.slane %v1313, 1
      %v1350 = vmul.f32 %v1283, %v1349
      %v1351 = vmul.f32 %v1284, %v1349
      %v1352 = vmul.f32 %v1285, %v1349
      %v1353 = vmul.f32 %v1286, %v1349
      %v1354 = vmul.f32 %v1287, %v1349
      %v1355 = vmul.f32 %v1288, %v1349
      %v1356 = vmul.f32 %v1289, %v1349
      %v1357 = vmul.f32 %v1290, %v1349
      %v1358 = vmul.f32 %v1291, %v1349
      %v1359 = vmul.f32 %v1292, %v1349
      %v1360 = vmul.f32 %v1293, %v1349
      %v1361 = vmul.f32 %v1294, %v1349
      %v1362 = vmul.f32 %v1295, %v1349
      %v1363 = vmul.f32 %v1296, %v1349
      %v1364 = vmul.f32 %v1297, %v1349
      %v1365 = vmul.f32 %v1298, %v1349
      %v1366 = vmul.f32 %v1299, %v1349
      %v1367 = vmul.f32 %v1300, %v1349
      %v1368 = vmul.f32 %v1301, %v1349
      %v1369 = vmul.f32 %v1302, %v1349
      %v1370 = vmul.f32 %v1303, %v1349
      %v1371 = vmul.f32 %v1304, %v1349
      %v1372 = vmul.f32 %v1305, %v1349
      %v1373 = vmul.f32 %v1306, %v1349
      %vm1398 = vcmask 1046528
      %v1399 = vrot.slane %v1350, 1
      %v1400 = vrot.slane %v1351, 1
      %v1401 = vsel %vm1398, %v1399, %v1400
      %v1402 = vrot.slane %v1352, 1
      %v1403 = vsel %vm1398, %v1400, %v1402
      %v1404 = vrot.slane %v1353, 1
      %v1405 = vrot.slane %v1354, 1
      %v1406 = vsel %vm1398, %v1404, %v1405
      %v1407 = vrot.slane %v1355, 1
      %v1408 = vsel %vm1398, %v1405, %v1407
      %v1409 = vrot.slane %v1356, 1
      %v1410 = vrot.slane %v1357, 1
      %v1411 = vsel %vm1398, %v1409, %v1410
      %v1412 = vrot.slane %v1358, 1
      %v1413 = vsel %vm1398, %v1410, %v1412
      %v1414 = vrot.slane %v1359, 1
      %v1415 = vrot.slane %v1360, 1
      %v1416 = vsel %vm1398, %v1414, %v1415
      %v1417 = vrot.slane %v1361, 1
      %v1418 = vsel %vm1398, %v1415, %v1417
      %v1419 = vrot.slane %v1362, 1
      %v1420 = vrot.slane %v1363, 1
      %v1421 = vsel %vm1398, %v1419, %v1420
      %v1422 = vrot.slane %v1364, 1
      %v1423 = vsel %vm1398, %v1420, %v1422
      %v1424 = vrot.slane %v1365, 1
      %v1425 = vrot.slane %v1366, 1
      %v1426 = vsel %vm1398, %v1424, %v1425
      %v1427 = vrot.slane %v1367, 1
      %v1428 = vsel %vm1398, %v1425, %v1427
      %v1429 = vrot.slane %v1368, 1
      %v1430 = vrot.slane %v1369, 1
      %v1431 = vsel %vm1398, %v1429, %v1430
      %v1432 = vrot.slane %v1370, 1
      %v1433 = vsel %vm1398, %v1430, %v1432
      %v1434 = vrot.slane %v1371, 1
      %v1435 = vrot.slane %v1372, 1
      %v1436 = vsel %vm1398, %v1434, %v1435
      %v1437 = vrot.slane %v1373, 1
      %v1438 = vsel %vm1398, %v1435, %v1437
      %v1455 = vadd.f32 %v1333, %v1401
      %v1456 = vadd.f32 %v1334, %v1403
      %v1457 = vadd.f32 %v1335, %v1406
      %v1458 = vadd.f32 %v1336, %v1408
      %v1459 = vadd.f32 %v1337, %v1411
      %v1460 = vadd.f32 %v1338, %v1413
      %v1461 = vadd.f32 %v1339, %v1416
      %v1462 = vadd.f32 %v1340, %v1418
      %v1463 = vadd.f32 %v1341, %v1421
      %v1464 = vadd.f32 %v1342, %v1423
      %v1465 = vadd.f32 %v1343, %v1426
      %v1466 = vadd.f32 %v1344, %v1428
      %v1467 = vadd.f32 %v1345, %v1431
      %v1468 = vadd.f32 %v1346, %v1433
      %v1469 = vadd.f32 %v1347, %v1436
      %v1470 = vadd.f32 %v1348, %v1438
      %v1471 = vperm.slane %v1313, 2
      %v1472 = vmul.f32 %v1283, %v1471
      %v1473 = vmul.f32 %v1284, %v1471
      %v1474 = vmul.f32 %v1285, %v1471
      %v1475 = vmul.f32 %v1286, %v1471
      %v1476 = vmul.f32 %v1287, %v1471
      %v1477 = vmul.f32 %v1288, %v1471
      %v1478 = vmul.f32 %v1289, %v1471
      %v1479 = vmul.f32 %v1290, %v1471
      %v1480 = vmul.f32 %v1291, %v1471
      %v1481 = vmul.f32 %v1292, %v1471
      %v1482 = vmul.f32 %v1293, %v1471
      %v1483 = vmul.f32 %v1294, %v1471
      %v1484 = vmul.f32 %v1295, %v1471
      %v1485 = vmul.f32 %v1296, %v1471
      %v1486 = vmul.f32 %v1297, %v1471
      %v1487 = vmul.f32 %v1298, %v1471
      %v1488 = vmul.f32 %v1299, %v1471
      %v1489 = vmul.f32 %v1300, %v1471
      %v1490 = vmul.f32 %v1301, %v1471
      %v1491 = vmul.f32 %v1302, %v1471
      %v1492 = vmul.f32 %v1303, %v1471
      %v1493 = vmul.f32 %v1304, %v1471
      %v1494 = vmul.f32 %v1305, %v1471
      %v1495 = vmul.f32 %v1306, %v1471
      %vm1520 = vcmask 1045504
      %v1521 = vrot.slane %v1472, 2
      %v1522 = vrot.slane %v1473, 2
      %v1523 = vsel %vm1520, %v1521, %v1522
      %v1524 = vrot.slane %v1474, 2
      %v1525 = vsel %vm1520, %v1522, %v1524
      %v1526 = vrot.slane %v1475, 2
      %v1527 = vrot.slane %v1476, 2
      %v1528 = vsel %vm1520, %v1526, %v1527
      %v1529 = vrot.slane %v1477, 2
      %v1530 = vsel %vm1520, %v1527, %v1529
      %v1531 = vrot.slane %v1478, 2
      %v1532 = vrot.slane %v1479, 2
      %v1533 = vsel %vm1520, %v1531, %v1532
      %v1534 = vrot.slane %v1480, 2
      %v1535 = vsel %vm1520, %v1532, %v1534
      %v1536 = vrot.slane %v1481, 2
      %v1537 = vrot.slane %v1482, 2
      %v1538 = vsel %vm1520, %v1536, %v1537
      %v1539 = vrot.slane %v1483, 2
      %v1540 = vsel %vm1520, %v1537, %v1539
      %v1541 = vrot.slane %v1484, 2
      %v1542 = vrot.slane %v1485, 2
      %v1543 = vsel %vm1520, %v1541, %v1542
      %v1544 = vrot.slane %v1486, 2
      %v1545 = vsel %vm1520, %v1542, %v1544
      %v1546 = vrot.slane %v1487, 2
      %v1547 = vrot.slane %v1488, 2
      %v1548 = vsel %vm1520, %v1546, %v1547
      %v1549 = vrot.slane %v1489, 2
      %v1550 = vsel %vm1520, %v1547, %v1549
      %v1551 = vrot.slane %v1490, 2
      %v1552 = vrot.slane %v1491, 2
      %v1553 = vsel %vm1520, %v1551, %v1552
      %v1554 = vrot.slane %v1492, 2
      %v1555 = vsel %vm1520, %v1552, %v1554
      %v1556 = vrot.slane %v1493, 2
      %v1557 = vrot.slane %v1494, 2
      %v1558 = vsel %vm1520, %v1556, %v1557
      %v1559 = vrot.slane %v1495, 2
      %v1560 = vsel %vm1520, %v1557, %v1559
      %v1577 = vadd.f32 %v1455, %v1523
      %v1578 = vadd.f32 %v1456, %v1525
      %v1579 = vadd.f32 %v1457, %v1528
      %v1580 = vadd.f32 %v1458, %v1530
      %v1581 = vadd.f32 %v1459, %v1533
      %v1582 = vadd.f32 %v1460, %v1535
      %v1583 = vadd.f32 %v1461, %v1538
      %v1584 = vadd.f32 %v1462, %v1540
      %v1585 = vadd.f32 %v1463, %v1543
      %v1586 = vadd.f32 %v1464, %v1545
      %v1587 = vadd.f32 %v1465, %v1548
      %v1588 = vadd.f32 %v1466, %v1550
      %v1589 = vadd.f32 %v1467, %v1553
      %v1590 = vadd.f32 %v1468, %v1555
      %v1591 = vadd.f32 %v1469, %v1558
      %v1592 = vadd.f32 %v1470, %v1560
      %v1593 = vperm.slane %v1314, 0
      %v1594 = vmul.f32 %v1286, %v1593
      %v1595 = vmul.f32 %v1287, %v1593
      %v1596 = vmul.f32 %v1289, %v1593
      %v1597 = vmul.f32 %v1290, %v1593
      %v1598 = vmul.f32 %v1292, %v1593
      %v1599 = vmul.f32 %v1293, %v1593
      %v1600 = vmul.f32 %v1295, %v1593
      %v1601 = vmul.f32 %v1296, %v1593
      %v1602 = vmul.f32 %v1298, %v1593
      %v1603 = vmul.f32 %v1299, %v1593
      %v1604 = vmul.f32 %v1301, %v1593
      %v1605 = vmul.f32 %v1302, %v1593
      %v1606 = vmul.f32 %v1304, %v1593
      %v1607 = vmul.f32 %v1305, %v1593
      %v1608 = vmul.f32 %v1307, %v1593
      %v1609 = vmul.f32 %v1308, %v1593
      %v1610 = vadd.f32 %v1577, %v1594
      %v1611 = vadd.f32 %v1578, %v1595
      %v1612 = vadd.f32 %v1579, %v1596
      %v1613 = vadd.f32 %v1580, %v1597
      %v1614 = vadd.f32 %v1581, %v1598
      %v1615 = vadd.f32 %v1582, %v1599
      %v1616 = vadd.f32 %v1583, %v1600
      %v1617 = vadd.f32 %v1584, %v1601
      %v1618 = vadd.f32 %v1585, %v1602
      %v1619 = vadd.f32 %v1586, %v1603
      %v1620 = vadd.f32 %v1587, %v1604
      %v1621 = vadd.f32 %v1588, %v1605
      %v1622 = vadd.f32 %v1589, %v1606
      %v1623 = vadd.f32 %v1590, %v1607
      %v1624 = vadd.f32 %v1591, %v1608
      %v1625 = vadd.f32 %v1592, %v1609
      %v1626 = vperm.slane %v1314, 1
      %v1627 = vmul.f32 %v1286, %v1626
      %v1628 = vmul.f32 %v1287, %v1626
      %v1629 = vmul.f32 %v1288, %v1626
      %v1630 = vmul.f32 %v1289, %v1626
      %v1631 = vmul.f32 %v1290, %v1626
      %v1632 = vmul.f32 %v1291, %v1626
      %v1633 = vmul.f32 %v1292, %v1626
      %v1634 = vmul.f32 %v1293, %v1626
      %v1635 = vmul.f32 %v1294, %v1626
      %v1636 = vmul.f32 %v1295, %v1626
      %v1637 = vmul.f32 %v1296, %v1626
      %v1638 = vmul.f32 %v1297, %v1626
      %v1639 = vmul.f32 %v1298, %v1626
      %v1640 = vmul.f32 %v1299, %v1626
      %v1641 = vmul.f32 %v1300, %v1626
      %v1642 = vmul.f32 %v1301, %v1626
      %v1643 = vmul.f32 %v1302, %v1626
      %v1644 = vmul.f32 %v1303, %v1626
      %v1645 = vmul.f32 %v1304, %v1626
      %v1646 = vmul.f32 %v1305, %v1626
      %v1647 = vmul.f32 %v1306, %v1626
      %v1648 = vmul.f32 %v1307, %v1626
      %v1649 = vmul.f32 %v1308, %v1626
      %v1650 = vmul.f32 %v1309, %v1626
      %v1675 = vrot.slane %v1627, 1
      %v1676 = vrot.slane %v1628, 1
      %v1677 = vsel %vm1398, %v1675, %v1676
      %v1678 = vrot.slane %v1629, 1
      %v1679 = vsel %vm1398, %v1676, %v1678
      %v1680 = vrot.slane %v1630, 1
      %v1681 = vrot.slane %v1631, 1
      %v1682 = vsel %vm1398, %v1680, %v1681
      %v1683 = vrot.slane %v1632, 1
      %v1684 = vsel %vm1398, %v1681, %v1683
      %v1685 = vrot.slane %v1633, 1
      %v1686 = vrot.slane %v1634, 1
      %v1687 = vsel %vm1398, %v1685, %v1686
      %v1688 = vrot.slane %v1635, 1
      %v1689 = vsel %vm1398, %v1686, %v1688
      %v1690 = vrot.slane %v1636, 1
      %v1691 = vrot.slane %v1637, 1
      %v1692 = vsel %vm1398, %v1690, %v1691
      %v1693 = vrot.slane %v1638, 1
      %v1694 = vsel %vm1398, %v1691, %v1693
      %v1695 = vrot.slane %v1639, 1
      %v1696 = vrot.slane %v1640, 1
      %v1697 = vsel %vm1398, %v1695, %v1696
      %v1698 = vrot.slane %v1641, 1
      %v1699 = vsel %vm1398, %v1696, %v1698
      %v1700 = vrot.slane %v1642, 1
      %v1701 = vrot.slane %v1643, 1
      %v1702 = vsel %vm1398, %v1700, %v1701
      %v1703 = vrot.slane %v1644, 1
      %v1704 = vsel %vm1398, %v1701, %v1703
      %v1705 = vrot.slane %v1645, 1
      %v1706 = vrot.slane %v1646, 1
      %v1707 = vsel %vm1398, %v1705, %v1706
      %v1708 = vrot.slane %v1647, 1
      %v1709 = vsel %vm1398, %v1706, %v1708
      %v1710 = vrot.slane %v1648, 1
      %v1711 = vrot.slane %v1649, 1
      %v1712 = vsel %vm1398, %v1710, %v1711
      %v1713 = vrot.slane %v1650, 1
      %v1714 = vsel %vm1398, %v1711, %v1713
      %v1731 = vadd.f32 %v1610, %v1677
      %v1732 = vadd.f32 %v1611, %v1679
      %v1733 = vadd.f32 %v1612, %v1682
      %v1734 = vadd.f32 %v1613, %v1684
      %v1735 = vadd.f32 %v1614, %v1687
      %v1736 = vadd.f32 %v1615, %v1689
      %v1737 = vadd.f32 %v1616, %v1692
      %v1738 = vadd.f32 %v1617, %v1694
      %v1739 = vadd.f32 %v1618, %v1697
      %v1740 = vadd.f32 %v1619, %v1699
      %v1741 = vadd.f32 %v1620, %v1702
      %v1742 = vadd.f32 %v1621, %v1704
      %v1743 = vadd.f32 %v1622, %v1707
      %v1744 = vadd.f32 %v1623, %v1709
      %v1745 = vadd.f32 %v1624, %v1712
      %v1746 = vadd.f32 %v1625, %v1714
      %v1747 = vperm.slane %v1314, 2
      %v1748 = vmul.f32 %v1286, %v1747
      %v1749 = vmul.f32 %v1287, %v1747
      %v1750 = vmul.f32 %v1288, %v1747
      %v1751 = vmul.f32 %v1289, %v1747
      %v1752 = vmul.f32 %v1290, %v1747
      %v1753 = vmul.f32 %v1291, %v1747
      %v1754 = vmul.f32 %v1292, %v1747
      %v1755 = vmul.f32 %v1293, %v1747
      %v1756 = vmul.f32 %v1294, %v1747
      %v1757 = vmul.f32 %v1295, %v1747
      %v1758 = vmul.f32 %v1296, %v1747
      %v1759 = vmul.f32 %v1297, %v1747
      %v1760 = vmul.f32 %v1298, %v1747
      %v1761 = vmul.f32 %v1299, %v1747
      %v1762 = vmul.f32 %v1300, %v1747
      %v1763 = vmul.f32 %v1301, %v1747
      %v1764 = vmul.f32 %v1302, %v1747
      %v1765 = vmul.f32 %v1303, %v1747
      %v1766 = vmul.f32 %v1304, %v1747
      %v1767 = vmul.f32 %v1305, %v1747
      %v1768 = vmul.f32 %v1306, %v1747
      %v1769 = vmul.f32 %v1307, %v1747
      %v1770 = vmul.f32 %v1308, %v1747
      %v1771 = vmul.f32 %v1309, %v1747
      %v1796 = vrot.slane %v1748, 2
      %v1797 = vrot.slane %v1749, 2
      %v1798 = vsel %vm1520, %v1796, %v1797
      %v1799 = vrot.slane %v1750, 2
      %v1800 = vsel %vm1520, %v1797, %v1799
      %v1801 = vrot.slane %v1751, 2
      %v1802 = vrot.slane %v1752, 2
      %v1803 = vsel %vm1520, %v1801, %v1802
      %v1804 = vrot.slane %v1753, 2
      %v1805 = vsel %vm1520, %v1802, %v1804
      %v1806 = vrot.slane %v1754, 2
      %v1807 = vrot.slane %v1755, 2
      %v1808 = vsel %vm1520, %v1806, %v1807
      %v1809 = vrot.slane %v1756, 2
      %v1810 = vsel %vm1520, %v1807, %v1809
      %v1811 = vrot.slane %v1757, 2
      %v1812 = vrot.slane %v1758, 2
      %v1813 = vsel %vm1520, %v1811, %v1812
      %v1814 = vrot.slane %v1759, 2
      %v1815 = vsel %vm1520, %v1812, %v1814
      %v1816 = vrot.slane %v1760, 2
      %v1817 = vrot.slane %v1761, 2
      %v1818 = vsel %vm1520, %v1816, %v1817
      %v1819 = vrot.slane %v1762, 2
      %v1820 = vsel %vm1520, %v1817, %v1819
      %v1821 = vrot.slane %v1763, 2
      %v1822 = vrot.slane %v1764, 2
      %v1823 = vsel %vm1520, %v1821, %v1822
      %v1824 = vrot.slane %v1765, 2
      %v1825 = vsel %vm1520, %v1822, %v1824
      %v1826 = vrot.slane %v1766, 2
      %v1827 = vrot.slane %v1767, 2
      %v1828 = vsel %vm1520, %v1826, %v1827
      %v1829 = vrot.slane %v1768, 2
      %v1830 = vsel %vm1520, %v1827, %v1829
      %v1831 = vrot.slane %v1769, 2
      %v1832 = vrot.slane %v1770, 2
      %v1833 = vsel %vm1520, %v1831, %v1832
      %v1834 = vrot.slane %v1771, 2
      %v1835 = vsel %vm1520, %v1832, %v1834
      %v1852 = vadd.f32 %v1731, %v1798
      %v1853 = vadd.f32 %v1732, %v1800
      %v1854 = vadd.f32 %v1733, %v1803
      %v1855 = vadd.f32 %v1734, %v1805
      %v1856 = vadd.f32 %v1735, %v1808
      %v1857 = vadd.f32 %v1736, %v1810
      %v1858 = vadd.f32 %v1737, %v1813
      %v1859 = vadd.f32 %v1738, %v1815
      %v1860 = vadd.f32 %v1739, %v1818
      %v1861 = vadd.f32 %v1740, %v1820
      %v1862 = vadd.f32 %v1741, %v1823
      %v1863 = vadd.f32 %v1742, %v1825
      %v1864 = vadd.f32 %v1743, %v1828
      %v1865 = vadd.f32 %v1744, %v1830
      %v1866 = vadd.f32 %v1745, %v1833
      %v1867 = vadd.f32 %v1746, %v1835
      %v1868 = vperm.slane %v1315, 0
      %v1869 = vmul.f32 %v1289, %v1868
      %v1870 = vmul.f32 %v1290, %v1868
      %v1871 = vmul.f32 %v1292, %v1868
      %v1872 = vmul.f32 %v1293, %v1868
      %v1873 = vmul.f32 %v1295, %v1868
      %v1874 = vmul.f32 %v1296, %v1868
      %v1875 = vmul.f32 %v1298, %v1868
      %v1876 = vmul.f32 %v1299, %v1868
      %v1877 = vmul.f32 %v1301, %v1868
      %v1878 = vmul.f32 %v1302, %v1868
      %v1879 = vmul.f32 %v1304, %v1868
      %v1880 = vmul.f32 %v1305, %v1868
      %v1881 = vmul.f32 %v1307, %v1868
      %v1882 = vmul.f32 %v1308, %v1868
      %v1883 = vmul.f32 %v1310, %v1868
      %v1884 = vmul.f32 %v1311, %v1868
      %v1885 = vadd.f32 %v1852, %v1869
      %v1886 = vadd.f32 %v1853, %v1870
      %v1887 = vadd.f32 %v1854, %v1871
      %v1888 = vadd.f32 %v1855, %v1872
      %v1889 = vadd.f32 %v1856, %v1873
      %v1890 = vadd.f32 %v1857, %v1874
      %v1891 = vadd.f32 %v1858, %v1875
      %v1892 = vadd.f32 %v1859, %v1876
      %v1893 = vadd.f32 %v1860, %v1877
      %v1894 = vadd.f32 %v1861, %v1878
      %v1895 = vadd.f32 %v1862, %v1879
      %v1896 = vadd.f32 %v1863, %v1880
      %v1897 = vadd.f32 %v1864, %v1881
      %v1898 = vadd.f32 %v1865, %v1882
      %v1899 = vadd.f32 %v1866, %v1883
      %v1900 = vadd.f32 %v1867, %v1884
      %v1901 = vperm.slane %v1315, 1
      %v1902 = vmul.f32 %v1289, %v1901
      %v1903 = vmul.f32 %v1290, %v1901
      %v1904 = vmul.f32 %v1291, %v1901
      %v1905 = vmul.f32 %v1292, %v1901
      %v1906 = vmul.f32 %v1293, %v1901
      %v1907 = vmul.f32 %v1294, %v1901
      %v1908 = vmul.f32 %v1295, %v1901
      %v1909 = vmul.f32 %v1296, %v1901
      %v1910 = vmul.f32 %v1297, %v1901
      %v1911 = vmul.f32 %v1298, %v1901
      %v1912 = vmul.f32 %v1299, %v1901
      %v1913 = vmul.f32 %v1300, %v1901
      %v1914 = vmul.f32 %v1301, %v1901
      %v1915 = vmul.f32 %v1302, %v1901
      %v1916 = vmul.f32 %v1303, %v1901
      %v1917 = vmul.f32 %v1304, %v1901
      %v1918 = vmul.f32 %v1305, %v1901
      %v1919 = vmul.f32 %v1306, %v1901
      %v1920 = vmul.f32 %v1307, %v1901
      %v1921 = vmul.f32 %v1308, %v1901
      %v1922 = vmul.f32 %v1309, %v1901
      %v1923 = vmul.f32 %v1310, %v1901
      %v1924 = vmul.f32 %v1311, %v1901
      %v1925 = vmul.f32 %v1312, %v1901
      %v1950 = vrot.slane %v1902, 1
      %v1951 = vrot.slane %v1903, 1
      %v1952 = vsel %vm1398, %v1950, %v1951
      %v1953 = vrot.slane %v1904, 1
      %v1954 = vsel %vm1398, %v1951, %v1953
      %v1955 = vrot.slane %v1905, 1
      %v1956 = vrot.slane %v1906, 1
      %v1957 = vsel %vm1398, %v1955, %v1956
      %v1958 = vrot.slane %v1907, 1
      %v1959 = vsel %vm1398, %v1956, %v1958
      %v1960 = vrot.slane %v1908, 1
      %v1961 = vrot.slane %v1909, 1
      %v1962 = vsel %vm1398, %v1960, %v1961
      %v1963 = vrot.slane %v1910, 1
      %v1964 = vsel %vm1398, %v1961, %v1963
      %v1965 = vrot.slane %v1911, 1
      %v1966 = vrot.slane %v1912, 1
      %v1967 = vsel %vm1398, %v1965, %v1966
      %v1968 = vrot.slane %v1913, 1
      %v1969 = vsel %vm1398, %v1966, %v1968
      %v1970 = vrot.slane %v1914, 1
      %v1971 = vrot.slane %v1915, 1
      %v1972 = vsel %vm1398, %v1970, %v1971
      %v1973 = vrot.slane %v1916, 1
      %v1974 = vsel %vm1398, %v1971, %v1973
      %v1975 = vrot.slane %v1917, 1
      %v1976 = vrot.slane %v1918, 1
      %v1977 = vsel %vm1398, %v1975, %v1976
      %v1978 = vrot.slane %v1919, 1
      %v1979 = vsel %vm1398, %v1976, %v1978
      %v1980 = vrot.slane %v1920, 1
      %v1981 = vrot.slane %v1921, 1
      %v1982 = vsel %vm1398, %v1980, %v1981
      %v1983 = vrot.slane %v1922, 1
      %v1984 = vsel %vm1398, %v1981, %v1983
      %v1985 = vrot.slane %v1923, 1
      %v1986 = vrot.slane %v1924, 1
      %v1987 = vsel %vm1398, %v1985, %v1986
      %v1988 = vrot.slane %v1925, 1
      %v1989 = vsel %vm1398, %v1986, %v1988
      %v2006 = vadd.f32 %v1885, %v1952
      %v2007 = vadd.f32 %v1886, %v1954
      %v2008 = vadd.f32 %v1887, %v1957
      %v2009 = vadd.f32 %v1888, %v1959
      %v2010 = vadd.f32 %v1889, %v1962
      %v2011 = vadd.f32 %v1890, %v1964
      %v2012 = vadd.f32 %v1891, %v1967
      %v2013 = vadd.f32 %v1892, %v1969
      %v2014 = vadd.f32 %v1893, %v1972
      %v2015 = vadd.f32 %v1894, %v1974
      %v2016 = vadd.f32 %v1895, %v1977
      %v2017 = vadd.f32 %v1896, %v1979
      %v2018 = vadd.f32 %v1897, %v1982
      %v2019 = vadd.f32 %v1898, %v1984
      %v2020 = vadd.f32 %v1899, %v1987
      %v2021 = vadd.f32 %v1900, %v1989
      %v2022 = vperm.slane %v1315, 2
      %v2023 = vmul.f32 %v1289, %v2022
      %v2024 = vmul.f32 %v1290, %v2022
      %v2025 = vmul.f32 %v1291, %v2022
      %v2026 = vmul.f32 %v1292, %v2022
      %v2027 = vmul.f32 %v1293, %v2022
      %v2028 = vmul.f32 %v1294, %v2022
      %v2029 = vmul.f32 %v1295, %v2022
      %v2030 = vmul.f32 %v1296, %v2022
      %v2031 = vmul.f32 %v1297, %v2022
      %v2032 = vmul.f32 %v1298, %v2022
      %v2033 = vmul.f32 %v1299, %v2022
      %v2034 = vmul.f32 %v1300, %v2022
      %v2035 = vmul.f32 %v1301, %v2022
      %v2036 = vmul.f32 %v1302, %v2022
      %v2037 = vmul.f32 %v1303, %v2022
      %v2038 = vmul.f32 %v1304, %v2022
      %v2039 = vmul.f32 %v1305, %v2022
      %v2040 = vmul.f32 %v1306, %v2022
      %v2041 = vmul.f32 %v1307, %v2022
      %v2042 = vmul.f32 %v1308, %v2022
      %v2043 = vmul.f32 %v1309, %v2022
      %v2044 = vmul.f32 %v1310, %v2022
      %v2045 = vmul.f32 %v1311, %v2022
      %v2046 = vmul.f32 %v1312, %v2022
      %v2071 = vrot.slane %v2023, 2
      %v2072 = vrot.slane %v2024, 2
      %v2073 = vsel %vm1520, %v2071, %v2072
      %v2074 = vrot.slane %v2025, 2
      %v2075 = vsel %vm1520, %v2072, %v2074
      %v2076 = vrot.slane %v2026, 2
      %v2077 = vrot.slane %v2027, 2
      %v2078 = vsel %vm1520, %v2076, %v2077
      %v2079 = vrot.slane %v2028, 2
      %v2080 = vsel %vm1520, %v2077, %v2079
      %v2081 = vrot.slane %v2029, 2
      %v2082 = vrot.slane %v2030, 2
      %v2083 = vsel %vm1520, %v2081, %v2082
      %v2084 = vrot.slane %v2031, 2
      %v2085 = vsel %vm1520, %v2082, %v2084
      %v2086 = vrot.slane %v2032, 2
      %v2087 = vrot.slane %v2033, 2
      %v2088 = vsel %vm1520, %v2086, %v2087
      %v2089 = vrot.slane %v2034, 2
      %v2090 = vsel %vm1520, %v2087, %v2089
      %v2091 = vrot.slane %v2035, 2
      %v2092 = vrot.slane %v2036, 2
      %v2093 = vsel %vm1520, %v2091, %v2092
      %v2094 = vrot.slane %v2037, 2
      %v2095 = vsel %vm1520, %v2092, %v2094
      %v2096 = vrot.slane %v2038, 2
      %v2097 = vrot.slane %v2039, 2
      %v2098 = vsel %vm1520, %v2096, %v2097
      %v2099 = vrot.slane %v2040, 2
      %v2100 = vsel %vm1520, %v2097, %v2099
      %v2101 = vrot.slane %v2041, 2
      %v2102 = vrot.slane %v2042, 2
      %v2103 = vsel %vm1520, %v2101, %v2102
      %v2104 = vrot.slane %v2043, 2
      %v2105 = vsel %vm1520, %v2102, %v2104
      %v2106 = vrot.slane %v2044, 2
      %v2107 = vrot.slane %v2045, 2
      %v2108 = vsel %vm1520, %v2106, %v2107
      %v2109 = vrot.slane %v2046, 2
      %v2110 = vsel %vm1520, %v2107, %v2109
      %v2127 = vadd.f32 %v2006, %v2073
      %v2128 = vadd.f32 %v2007, %v2075
      %v2129 = vadd.f32 %v2008, %v2078
      %v2130 = vadd.f32 %v2009, %v2080
      %v2131 = vadd.f32 %v2010, %v2083
      %v2132 = vadd.f32 %v2011, %v2085
      %v2133 = vadd.f32 %v2012, %v2088
      %v2134 = vadd.f32 %v2013, %v2090
      %v2135 = vadd.f32 %v2014, %v2093
      %v2136 = vadd.f32 %v2015, %v2095
      %v2137 = vadd.f32 %v2016, %v2098
      %v2138 = vadd.f32 %v2017, %v2100
      %v2139 = vadd.f32 %v2018, %v2103
      %v2140 = vadd.f32 %v2019, %v2105
      %v2141 = vadd.f32 %v2020, %v2108
      %v2142 = vadd.f32 %v2021, %v2110
      %v2143 = vld [vmem:[%s5] sm:$0x1]
      %v2145 = vperm.slane %v2143, 0
      %v2147 = vmul.f32 %v2127, %v2145
      %v2148 = vmul.f32 %v2128, %v2145
      %v2149 = vmul.f32 %v2129, %v2145
      %v2150 = vmul.f32 %v2130, %v2145
      %v2151 = vmul.f32 %v2131, %v2145
      %v2152 = vmul.f32 %v2132, %v2145
      %v2153 = vmul.f32 %v2133, %v2145
      %v2154 = vmul.f32 %v2134, %v2145
      %v2155 = vmul.f32 %v2135, %v2145
      %v2156 = vmul.f32 %v2136, %v2145
      %v2157 = vmul.f32 %v2137, %v2145
      %v2158 = vmul.f32 %v2138, %v2145
      %v2159 = vmul.f32 %v2139, %v2145
      %v2160 = vmul.f32 %v2140, %v2145
      %v2161 = vmul.f32 %v2141, %v2145
      %v2162 = vmul.f32 %v2142, %v2145
      %v2163 = vld [vmem:[%s6] sm:$0x1]
      %v2165 = vperm.slane %v2163, 0
      %v2167 = vadd.f32 %v2147, %v2165
      %v2168 = vadd.f32 %v2148, %v2165
      %v2169 = vadd.f32 %v2149, %v2165
      %v2170 = vadd.f32 %v2150, %v2165
      %v2171 = vadd.f32 %v2151, %v2165
      %v2172 = vadd.f32 %v2152, %v2165
      %v2173 = vadd.f32 %v2153, %v2165
      %v2174 = vadd.f32 %v2154, %v2165
      %v2175 = vadd.f32 %v2155, %v2165
      %v2176 = vadd.f32 %v2156, %v2165
      %v2177 = vadd.f32 %v2157, %v2165
      %v2178 = vadd.f32 %v2158, %v2165
      %v2179 = vadd.f32 %v2159, %v2165
      %v2180 = vadd.f32 %v2160, %v2165
      %v2181 = vadd.f32 %v2161, %v2165
      %v2182 = vadd.f32 %v2162, %v2165
      %v2183 = vmax.f32 %v2167, 0.0
      %v2184 = vmax.f32 %v2168, 0.0
      %v2185 = vmax.f32 %v2169, 0.0
      %v2186 = vmax.f32 %v2170, 0.0
      %v2187 = vmax.f32 %v2171, 0.0
      %v2188 = vmax.f32 %v2172, 0.0
      %v2189 = vmax.f32 %v2173, 0.0
      %v2190 = vmax.f32 %v2174, 0.0
      %v2191 = vmax.f32 %v2175, 0.0
      %v2192 = vmax.f32 %v2176, 0.0
      %v2193 = vmax.f32 %v2177, 0.0
      %v2194 = vmax.f32 %v2178, 0.0
      %v2195 = vmax.f32 %v2179, 0.0
      %v2196 = vmax.f32 %v2180, 0.0
      %v2197 = vmax.f32 %v2181, 0.0
      %v2198 = vmax.f32 %v2182, 0.0
      %v2199 = vmin.f32 %v2183, 6.0
      %v2200 = vmin.f32 %v2184, 6.0
      %v2201 = vmin.f32 %v2185, 6.0
      %v2202 = vmin.f32 %v2186, 6.0
      %v2203 = vmin.f32 %v2187, 6.0
      %v2204 = vmin.f32 %v2188, 6.0
      %v2205 = vmin.f32 %v2189, 6.0
      %v2206 = vmin.f32 %v2190, 6.0
      %v2207 = vmin.f32 %v2191, 6.0
      %v2208 = vmin.f32 %v2192, 6.0
      %v2209 = vmin.f32 %v2193, 6.0
      %v2210 = vmin.f32 %v2194, 6.0
      %v2211 = vmin.f32 %v2195, 6.0
      %v2212 = vmin.f32 %v2196, 6.0
      %v2213 = vmin.f32 %v2197, 6.0
      %v2214 = vmin.f32 %v2198, 6.0
      %v2215 = vld [vmem:[%s7] sm:$0xff]
      %v2216 = vld [vmem:[%s7 + $0x8] sm:$0xff]
      %v2217 = vld [vmem:[%s7 + $0x10] sm:$0xff]
      %v2218 = vld [vmem:[%s7 + $0x18] sm:$0xff]
      %v2219 = vld [vmem:[%s7 + $0x20] sm:$0xff]
      %v2220 = vld [vmem:[%s7 + $0x28] sm:$0xff]
      %v2221 = vld [vmem:[%s7 + $0x30] sm:$0xff]
      %v2222 = vld [vmem:[%s7 + $0x38] sm:$0xff]
      %v2223 = vld [vmem:[%s7 + $0x40] sm:$0xff]
      %v2224 = vld [vmem:[%s7 + $0x48] sm:$0xff]
      %v2225 = vld [vmem:[%s7 + $0x50] sm:$0xff]
      %v2226 = vld [vmem:[%s7 + $0x58] sm:$0xff]
      %v2227 = vld [vmem:[%s7 + $0x60] sm:$0xff]
      %v2228 = vld [vmem:[%s7 + $0x68] sm:$0xff]
      %v2229 = vld [vmem:[%s7 + $0x70] sm:$0xff]
      %v2230 = vld [vmem:[%s7 + $0x78] sm:$0xff]
      %2231 = vmatpush.msra.mxu0 %v2230
      %2232 = vmatpush.msra.mxu0 %v2229
      %2233 = vmatpush.msra.mxu0 %v2228
      %2234 = vmatpush.msra.mxu0 %v2227
      %2235 = vmatpush.msra.mxu0 %v2226
      %2236 = vmatpush.msra.mxu0 %v2225
      %2237 = vmatpush.msra.mxu0 %v2224
      %2238 = vmatpush.msra.mxu0 %v2223
      %2239 = vmatpush.msra.mxu0 %v2222
      %2240 = vmatpush.msra.mxu0 %v2221
      %2241 = vmatpush.msra.mxu0 %v2220
      %2242 = vmatpush.msra.mxu0 %v2219
      %2243 = vmatpush.msra.mxu0 %v2218
      %2244 = vmatpush.msra.mxu0 %v2217
      %2245 = vmatpush.msra.mxu0 %v2216
      %2246 = vmatpush.msra.mxu0 %v2215
      %2247 = vmatmul.f32.gmra.mxu0 %v2199
      %v2248 = vpop.f32.mrf.mxu0
      %v2249 = vadd.f32 0.0, %v2248
      %2250 = vmatmul.f32.gmra.mxu0 %v2200
      %v2251 = vpop.f32.mrf.mxu0
      %v2252 = vadd.f32 0.0, %v2251
      %2253 = vmatmul.f32.gmra.mxu0 %v2201
      %v2254 = vpop.f32.mrf.mxu0
      %v2255 = vadd.f32 0.0, %v2254
      %2256 = vmatmul.f32.gmra.mxu0 %v2202
      %v2257 = vpop.f32.mrf.mxu0
      %v2258 = vadd.f32 0.0, %v2257
      %2259 = vmatmul.f32.gmra.mxu0 %v2203
      %v2260 = vpop.f32.mrf.mxu0
      %v2261 = vadd.f32 0.0, %v2260
      %2262 = vmatmul.f32.gmra.mxu0 %v2204
      %v2263 = vpop.f32.mrf.mxu0
      %v2264 = vadd.f32 0.0, %v2263
      %2265 = vmatmul.f32.gmra.mxu0 %v2205
      %v2266 = vpop.f32.mrf.mxu0
      %v2267 = vadd.f32 0.0, %v2266
      %2268 = vmatmul.f32.gmra.mxu0 %v2206
      %v2269 = vpop.f32.mrf.mxu0
      %v2270 = vadd.f32 0.0, %v2269
      %2271 = vmatmul.f32.gmra.mxu0 %v2207
      %v2272 = vpop.f32.mrf.mxu0
      %v2273 = vadd.f32 0.0, %v2272
      %2274 = vmatmul.f32.gmra.mxu0 %v2208
      %v2275 = vpop.f32.mrf.mxu0
      %v2276 = vadd.f32 0.0, %v2275
      %2277 = vmatmul.f32.gmra.mxu0 %v2209
      %v2278 = vpop.f32.mrf.mxu0
      %v2279 = vadd.f32 0.0, %v2278
      %2280 = vmatmul.f32.gmra.mxu0 %v2210
      %v2281 = vpop.f32.mrf.mxu0
      %v2282 = vadd.f32 0.0, %v2281
      %2283 = vmatmul.f32.gmra.mxu0 %v2211
      %v2284 = vpop.f32.mrf.mxu0
      %v2285 = vadd.f32 0.0, %v2284
      %2286 = vmatmul.f32.gmra.mxu0 %v2212
      %v2287 = vpop.f32.mrf.mxu0
      %v2288 = vadd.f32 0.0, %v2287
      %2289 = vmatmul.f32.gmra.mxu0 %v2213
      %v2290 = vpop.f32.mrf.mxu0
      %v2291 = vadd.f32 0.0, %v2290
      %2292 = vmatmul.f32.gmra.mxu0 %v2214
      %v2293 = vpop.f32.mrf.mxu0
      %v2294 = vadd.f32 0.0, %v2293
      %2295 = vdwg.mxu0
      %v2296 = vld [vmem:[%s8] sm:$0x1]
      %v2298 = vperm.slane %v2296, 0
      %v2300 = vmul.f32 %v2249, %v2298
      %v2301 = vmul.f32 %v2252, %v2298
      %v2302 = vmul.f32 %v2255, %v2298
      %v2303 = vmul.f32 %v2258, %v2298
      %v2304 = vmul.f32 %v2261, %v2298
      %v2305 = vmul.f32 %v2264, %v2298
      %v2306 = vmul.f32 %v2267, %v2298
      %v2307 = vmul.f32 %v2270, %v2298
      %v2308 = vmul.f32 %v2273, %v2298
      %v2309 = vmul.f32 %v2276, %v2298
      %v2310 = vmul.f32 %v2279, %v2298
      %v2311 = vmul.f32 %v2282, %v2298
      %v2312 = vmul.f32 %v2285, %v2298
      %v2313 = vmul.f32 %v2288, %v2298
      %v2314 = vmul.f32 %v2291, %v2298
      %v2315 = vmul.f32 %v2294, %v2298
      %v2316 = vld [vmem:[%s9] sm:$0x1]
      %v2318 = vperm.slane %v2316, 0
      %v2320 = vadd.f32 %v2300, %v2318
      %v2321 = vadd.f32 %v2301, %v2318
      %v2322 = vadd.f32 %v2302, %v2318
      %v2323 = vadd.f32 %v2303, %v2318
      %v2324 = vadd.f32 %v2304, %v2318
      %v2325 = vadd.f32 %v2305, %v2318
      %v2326 = vadd.f32 %v2306, %v2318
      %v2327 = vadd.f32 %v2307, %v2318
      %v2328 = vadd.f32 %v2308, %v2318
      %v2329 = vadd.f32 %v2309, %v2318
      %v2330 = vadd.f32 %v2310, %v2318
      %v2331 = vadd.f32 %v2311, %v2318
      %v2332 = vadd.f32 %v2312, %v2318
      %v2333 = vadd.f32 %v2313, %v2318
      %v2334 = vadd.f32 %v2314, %v2318
      %v2335 = vadd.f32 %v2315, %v2318
      %v2336 = vrot.slane %v391, 1
      %v2337 = vrot.slane %v392, 1
      %v2338 = vsel %vm1398, %v2336, %v2337
      %v2339 = vrot.slane %v393, 1
      %v2340 = vsel %vm1398, %v2337, %v2339
      %v2341 = vrot.slane %v394, 1
      %v2342 = vrot.slane %v395, 1
      %v2343 = vsel %vm1398, %v2341, %v2342
      %v2344 = vrot.slane %v396, 1
      %v2345 = vsel %vm1398, %v2342, %v2344
      %v2346 = vrot.slane %v397, 1
      %v2347 = vrot.slane %v398, 1
      %v2348 = vsel %vm1398, %v2346, %v2347
      %v2349 = vrot.slane %v399, 1
      %v2350 = vsel %vm1398, %v2347, %v2349
      %v2351 = vrot.slane %v400, 1
      %v2352 = vrot.slane %v401, 1
      %v2353 = vsel %vm1398, %v2351, %v2352
      %v2354 = vrot.slane %v402, 1
      %v2355 = vsel %vm1398, %v2352, %v2354
      %v2356 = vrot.slane %v403, 1
      %v2357 = vrot.slane %v404, 1
      %v2358 = vsel %vm1398, %v2356, %v2357
      %v2359 = vrot.slane %v405, 1
      %v2360 = vsel %vm1398, %v2357, %v2359
      %v2361 = vrot.slane %v406, 1
      %v2362 = vrot.slane %v407, 1
      %v2363 = vsel %vm1398, %v2361, %v2362
      %v2364 = vrot.slane %v408, 1
      %v2365 = vsel %vm1398, %v2362, %v2364
      %v2366 = vrot.slane %v409, 1
      %v2367 = vrot.slane %v410, 1
      %v2368 = vsel %vm1398, %v2366, %v2367
      %v2369 = vrot.slane %v411, 1
      %v2370 = vsel %vm1398, %v2367, %v2369
      %v2371 = vrot.slane %v412, 1
      %v2372 = vrot.slane %v413, 1
      %v2373 = vsel %vm1398, %v2371, %v2372
      %v2374 = vrot.slane %v414, 1
      %v2375 = vsel %vm1398, %v2372, %v2374
      %v2392 = vadd.f32 %v2320, %v2338
      %v2393 = vadd.f32 %v2321, %v2340
      %v2394 = vadd.f32 %v2322, %v2343
      %v2395 = vadd.f32 %v2323, %v2345
      %v2396 = vadd.f32 %v2324, %v2348
      %v2397 = vadd.f32 %v2325, %v2350
      %v2398 = vadd.f32 %v2326, %v2353
      %v2399 = vadd.f32 %v2327, %v2355
      %v2400 = vadd.f32 %v2328, %v2358
      %v2401 = vadd.f32 %v2329, %v2360
      %v2402 = vadd.f32 %v2330, %v2363
      %v2403 = vadd.f32 %v2331, %v2365
      %v2404 = vadd.f32 %v2332, %v2368
      %v2405 = vadd.f32 %v2333, %v2370
      %v2406 = vadd.f32 %v2334, %v2373
      %v2407 = vadd.f32 %v2335, %v2375
      %2408 = vst.msk [vmem:[%s383] sm:$0xff] %vm629, %v2392
      %2409 = vst.msk [vmem:[%s383 + $0x8] sm:$0xff] %vm629, %v2393
      %2410 = vst.msk [vmem:[%s383 + $0x10] sm:$0xff] %vm629, %v2394
      %2411 = vst.msk [vmem:[%s383 + $0x18] sm:$0xff] %vm629, %v2395
      %2412 = vst.msk [vmem:[%s383 + $0x20] sm:$0xff] %vm629, %v2396
      %2413 = vst.msk [vmem:[%s383 + $0x28] sm:$0xff] %vm629, %v2397
      %2414 = vst.msk [vmem:[%s383 + $0x30] sm:$0xff] %vm629, %v2398
      %2415 = vst.msk [vmem:[%s383 + $0x38] sm:$0xff] %vm629, %v2399
      %2416 = vst.msk [vmem:[%s383 + $0x40] sm:$0xff] %vm629, %v2400
      %2417 = vst.msk [vmem:[%s383 + $0x48] sm:$0xff] %vm629, %v2401
      %2418 = vst.msk [vmem:[%s383 + $0x50] sm:$0xff] %vm629, %v2402
      %2419 = vst.msk [vmem:[%s383 + $0x58] sm:$0xff] %vm629, %v2403
      %2420 = vst.msk [vmem:[%s383 + $0x60] sm:$0xff] %vm629, %v2404
      %2421 = vst.msk [vmem:[%s383 + $0x68] sm:$0xff] %vm629, %v2405
      %2422 = vst.msk [vmem:[%s383 + $0x70] sm:$0xff] %vm629, %v2406
      %2423 = vst.msk [vmem:[%s383 + $0x78] sm:$0xff] %vm629, %v2407
      %s2424 = smul.u32 8, %s26
      %p2425 = scmp.lt.s32.totalorder %s25, 1
      %s2426 = scalar_select %p2425, %s25, 1
      %p2427 = scmp.lt.s32.totalorder %s2424, 15
      %s2428 = scalar_select %p2427, %s2424, 15
      %s2429 = smul.addr %s2428, 2
      %s2430 = smul.addr %s2426, 32
      %s2431 = sadd.s32 %s2429, %s2430
      %s2432 = smul.addr %s2431, 8
      %s2433 = scalar_lea.vmem %s10, %s2432
      // Predicated region
      $region61: #{inverted_residual_forward.1} parent=59 // pred_check
        %p2434 = pneg %p268
      $region62: #{inverted_residual_forward.1} parent=59 // pred_check_branch
        %2436 = sbr.rel (%p2434) target = $region64
      $region63: #{inverted_residual_forward.1} parent=59 // pred_region
        %s2437 = smul.u32 8, %s26
      $region64: #{inverted_residual_forward.1} parent=59 // pred_fallthru
        _
    $region60: #{inverted_residual_forward.1} parent=5 // pred_fallthru
      _
    %p2438 = scmp.le.s32.totalorder 2, %s16
    // Predicated region
    $region65: #{inverted_residual_forward.1} parent=5 // pred_check
      %p2439 = pneg %p2438
    $region66: #{inverted_residual_forward.1} parent=5 // pred_check_branch
      %2441 = sbr.rel (%p2439) target = $region68
    $region67: #{inverted_residual_forward.1} parent=5 // pred_region
      %s2442 = ssub.s32 %s16, 2
      // Predicated region
      $region69: #{inverted_residual_forward.1} parent=67 // pred_check
        %p2443 = pneg %p274
      $region70: #{inverted_residual_forward.1} parent=67 // pred_check_branch
        %2445 = sbr.rel (%p2443) target = $region72
      $region71: #{inverted_residual_forward.1} parent=67 // pred_region
        %s2446 = smul.u32 8, %s28
        %p2447 = scmp.lt.s32.totalorder %s27, 1
        %s2448 = scalar_select %p2447, %s27, 1
        %p2449 = scmp.lt.s32.totalorder %s2446, 15
        %s2450 = scalar_select %p2449, %s2446, 15
        %s2451 = smul.addr %s2450, 2
        %s2452 = smul.addr %s2448, 32
        %s2453 = sadd.s32 %s2451, %s2452
        %s2454 = smul.addr %s2453, 8
        %s2455 = scalar_lea.vmem %s10, %s2454
      $region72: #{inverted_residual_forward.1} parent=67 // pred_fallthru
        _
    $region68: #{inverted_residual_forward.1} parent=5 // pred_fallthru
      _
  $region6: #{inverted_residual_forward.1} parent=0 // loop_footer
    %s20 = sadd.s32 1, %s16
  $region7: #{inverted_residual_forward.1} parent=0 // loop_footer_branch
    %15 = sbr.rel target = $region3
  $region8: #{inverted_residual_forward.1} parent=0 // loop_exit
    _

</llo_original>
